<compile_context>
chip_gen: v5e
topology: v5e:2x2
jax: 0.10.0
libtpu: 0.0.40
codegen_flags: <defaults>
</compile_context>

<pallas_src>
import functools

import numpy as np

import jax
import jax.numpy as jnp
from jax.experimental import pallas as pl
from jax.experimental.pallas import tpu as pltpu


# ----------------------------------------------------------------------------
# Fused Pallas kernel: conv trunk + dueling head
# ----------------------------------------------------------------------------
def _dqn_fused_kernel(x_ref, wf1_ref, bf1_ref, wf2_ref, bf2_ref,
                      wf3_ref, bf3_ref, w1_ref, b1_ref, w2_ref, b2_ref,
                      q_ref, *, n_actions):
    """x_ref: [H, B_pad, W*C].  All weights pre-folded/packed (see prepare_params).

    conv weights wfN_ref: [3(kh), W_in*C_in, W_out*C_out]; biases bfN: [1, W_out*C_out].
    head: w1 [F, 512], b1 [1, 512]; w2 [512, 128] packed (col0=value, 1..A=adv).
    Output q_ref: [B_pad, 128] lane-dense slab.
    """

    def conv_layer(get_row, h_in, wf_ref, bf_ref):
        # 3x3 / stride-2 / valid conv + ReLU.  One output row per oh; the kw
        # offsets & column stride are already folded into wf_ref[kh].
        h_out = (h_in - 3) // 2 + 1
        bias = bf_ref[...]                                   # [1, W_out*C_out]
        rows = []
        for oh in range(h_out):
            acc = bias
            for kh in range(3):
                acc = acc + jnp.dot(get_row(2 * oh + kh), wf_ref[kh],
                                    preferred_element_type=jnp.float32)
            rows.append(jnp.maximum(acc, 0.0))               # [B_pad, W_out*C_out]
        return rows, h_out

    rows1, h1 = conv_layer(lambda r: x_ref[r], x_ref.shape[0], wf1_ref, bf1_ref)
    rows2, h2 = conv_layer(lambda r: rows1[r], h1, wf2_ref, bf2_ref)
    rows3, h3 = conv_layer(lambda r: rows2[r], h2, wf3_ref, bf3_ref)

    # Flatten trunk output in (h, w, c) order; w1 rows were permuted to match.
    feat = rows3[0] if h3 == 1 else jnp.concatenate(rows3, axis=1)   # [B_pad, F]

    # Dueling head: one fused fc1 (value|adv), one packed fc2.
    hid = jnp.maximum(
        jnp.dot(feat, w1_ref[...], preferred_element_type=jnp.float32) + b1_ref[...],
        0.0)                                                          # [B_pad, 512]
    out = jnp.dot(hid, w2_ref[...], preferred_element_type=jnp.float32) + b2_ref[...]
    # out: [B_pad, 128];  col 0 = value, cols 1..n_actions = advantage, rest = 0.

    lanes = jax.lax.broadcasted_iota(jnp.int32, out.shape, 1)
    value = jnp.sum(jnp.where(lanes == 0, out, 0.0), axis=1, keepdims=True)
    adv_sum = jnp.sum(jnp.where((lanes >= 1) & (lanes <= n_actions), out, 0.0),
                      axis=1, keepdims=True)
    adv_mean = adv_sum * (1.0 / n_actions)
    q_ref[...] = (value + out - adv_mean).astype(q_ref.dtype)


def _fused_forward_call(x, p, n_actions):
    # Single invocation, everything resident in VMEM (< 1 MiB of operands).
    # NOTE: for large serving batches one would add a batch-tile grid axis here
    # with dimension_semantics=("parallel",) so v7x's second TensorCore is used.
    b_pad = x.shape[1]
    n_lane = p["w2"].shape[1]
    kernel = functools.partial(_dqn_fused_kernel, n_actions=n_actions)
    args = (x, p["wf1"], p["bf1"], p["wf2"], p["bf2"], p["wf3"], p["bf3"],
            p["w1"], p["b1"], p["w2"], p["b2"])
    return pl.pallas_call(
        kernel,
        out_shape=jax.ShapeDtypeStruct((b_pad, n_lane), jnp.float32),
        in_specs=[pl.BlockSpec(memory_space=pltpu.MemorySpace.VMEM)] * len(args),
        out_specs=pl.BlockSpec(memory_space=pltpu.MemorySpace.VMEM),
    )(*args)


# ----------------------------------------------------------------------------
# Offline weight repacking (runs once per weight update, outside the kernel)
# ----------------------------------------------------------------------------
def _conv_out(x, k=3, s=2):
    return (x - k) // s + 1


def _fold_conv_weight(w, w_in):
    """w: [Cout, Cin, 3, 3] (PyTorch) -> folded [3, W_in*Cin, W_out*Cout].

    folded[kh, w*Cin + ci, ow*Cout + co] = w[co, ci, kh, w - 2*ow] for
    0 <= w - 2*ow < 3, else 0.  This folds the kw offsets and the stride-2
    column subsample into the matmul weight.
    """
    cout, cin, kk, _ = w.shape
    w_out = _conv_out(w_in)
    wt = jnp.transpose(w, (2, 3, 1, 0)).astype(jnp.float32)     # [kh, kw, cin, cout]
    folded = jnp.zeros((kk, w_in * cin, w_out * cout), jnp.float32)
    for ow in range(w_out):
        for kw in range(kk):
            col = 2 * ow + kw
            folded = folded.at[:, col * cin:(col + 1) * cin,
                               ow * cout:(ow + 1) * cout].set(wt[:, kw])
    return folded


def prepare_params(params, state_shape, n_actions):
    """Build the kernel-ready operand set from PyTorch-layout parameters."""
    c_in, hgt, wid = state_shape
    assert params["conv1_w"].shape[1] == c_in

    hh1, ww1 = _conv_out(hgt), _conv_out(wid)
    hh2, ww2 = _conv_out(hh1), _conv_out(ww1)
    hh3, ww3 = _conv_out(hh2), _conv_out(ww2)
    c3 = params["conv3_w"].shape[0]
    feat = c3 * hh3 * ww3

    wf1 = _fold_conv_weight(params["conv1_w"], wid)
    wf2 = _fold_conv_weight(params["conv2_w"], ww1)
    wf3 = _fold_conv_weight(params["conv3_w"], ww2)
    bf1 = jnp.tile(params["conv1_b"], (ww1,))[None, :]
    bf2 = jnp.tile(params["conv2_b"], (ww2,))[None, :]
    bf3 = jnp.tile(params["conv3_b"], (ww3,))[None, :]

    # Permute fc1 rows from NCHW-flatten order (PyTorch .view) to the kernel's
    # (h, w, c) flatten order (identity when the final spatial size is 1x1).
    perm = np.transpose(np.arange(feat).reshape(c3, hh3, ww3), (1, 2, 0)).reshape(-1)
    w1v = params["w1v"][perm, :]
    w1a = params["w1a"][perm, :]
    w1_cat = jnp.concatenate([w1v, w1a], axis=1)                # [F, 512]
    b1_cat = jnp.concatenate([params["b1v"], params["b1a"]], axis=1)

    hidden = params["w2v"].shape[0]                             # 256
    n_lane = 128
    assert n_actions + 1 <= n_lane, "packed head requires n_actions <= 127"
    w2p = jnp.zeros((2 * hidden, n_lane), jnp.float32)
    w2p = w2p.at[:hidden, 0:1].set(params["w2v"])
    w2p = w2p.at[hidden:, 1:1 + n_actions].set(params["w2a"])
    b2p = jnp.zeros((1, n_lane), jnp.float32)
    b2p = b2p.at[0:1, 0:1].set(params["b2v"])
    b2p = b2p.at[0:1, 1:1 + n_actions].set(params["b2a"])

    return {"wf1": wf1, "bf1": bf1, "wf2": wf2, "bf2": bf2, "wf3": wf3, "bf3": bf3,
            "w1": w1_cat, "b1": b1_cat, "w2": w2p, "b2": b2p}


# ----------------------------------------------------------------------------
# Parameter init (PyTorch-style layouts) and forward wrapper
# ----------------------------------------------------------------------------
def init_params(key, state_shape, n_actions):
    c_in, hgt, wid = state_shape
    assert c_in == 4
    hh3 = _conv_out(_conv_out(_conv_out(hgt)))
    ww3 = _conv_out(_conv_out(_conv_out(wid)))
    feat = 64 * hh3 * ww3

    keys = jax.random.split(key, 14)

    def uniform(k, shape, fan_in):
        bound = 1.0 / float(np.sqrt(fan_in))
        return jax.random.uniform(k, shape, jnp.float32, -bound, bound)

    return {
        # conv trunk (PyTorch layout: [Cout, Cin, kh, kw])
        "conv1_w": uniform(keys[0], (16, 4, 3, 3), 4 * 9),
        "conv1_b": uniform(keys[1], (16,), 4 * 9),
        "conv2_w": uniform(keys[2], (32, 16, 3, 3), 16 * 9),
        "conv2_b": uniform(keys[3], (32,), 16 * 9),
        "conv3_w": uniform(keys[4], (64, 32, 3, 3), 32 * 9),
        "conv3_b": uniform(keys[5], (64,), 32 * 9),
        # dueling head (stored as [in, out] for x @ W)
        "w1v": uniform(keys[6], (feat, 256), feat),
        "b1v": uniform(keys[7], (1, 256), feat),
        "w1a": uniform(keys[8], (feat, 256), feat),
        "b1a": uniform(keys[9], (1, 256), feat),
        "w2v": uniform(keys[10], (256, 1), 256),
        "b2v": uniform(keys[11], (1, 1), 256),
        "w2a": uniform(keys[12], (256, n_actions), 256),
        "b2a": uniform(keys[13], (1, n_actions), 256),
    }


@functools.partial(jax.jit, static_argnames=("n_actions",))
def dqn_forward(prepared, state_t, n_actions):
    """state_t: [B, 4, H, W] float32 (NCHW) -> qvalues [B, n_actions]."""
    b, c, hgt, wid = state_t.shape
    b_pad = ((max(b, 8) + 7) // 8) * 8
    # NCHW -> [H, B_pad, W*C] rows (lane axis = W*C); zero-pad batch to 8 sublanes.
    x = jnp.transpose(state_t, (2, 0, 3, 1)).reshape(hgt, b, wid * c)
    x = jnp.pad(x, ((0, 0), (0, b_pad - b), (0, 0)))
    q_slab = _fused_forward_call(x, prepared, n_actions)       # [B_pad, 128]
    return q_slab[:b, 1:1 + n_actions]


# ----------------------------------------------------------------------------
# Pure-JAX reference (for a correctness sanity check)
# ----------------------------------------------------------------------------
def dqn_forward_reference(params, state_t):
    dn = ("NCHW", "OIHW", "NCHW")
    h = state_t
    for i in (1, 2, 3):
        w = params[f"conv{i}_w"]
        b = params[f"conv{i}_b"]
        h = jax.lax.conv_general_dilated(h, w, window_strides=(2, 2),
                                         padding="VALID", dimension_numbers=dn)
        h = jax.nn.relu(h + b[None, :, None, None])
    h = h.reshape(h.shape[0], -1)
    v = jax.nn.relu(h @ params["w1v"] + params["b1v"]) @ params["w2v"] + params["b2v"]
    a = jax.nn.relu(h @ params["w1a"] + params["b1a"]) @ params["w2a"] + params["b2a"]
    return v + a - jnp.mean(a, axis=1, keepdims=True)


if __name__ == "__main__":
    # NOTE: get_qvalues / sample_actions in the original module are host-side
    # numpy epsilon-greedy utilities, not part of the forward pass.
    key = jax.random.PRNGKey(0)
    k_params, k_input = jax.random.split(key)

    state_shape = (4, 16, 16)   # 16 -> 7 -> 3 -> 1 spatial; feature size = 64
    n_actions = 6
    batch = 2

    params = init_params(k_params, state_shape, n_actions)
    prepared = prepare_params(params, state_shape, n_actions)   # offline repack
    x = jax.random.normal(k_input, (batch,) + state_shape, dtype=jnp.float32)

    q = dqn_forward(prepared, x, n_actions)
    jax.block_until_ready(q)
    assert q.shape == (batch, n_actions)

    q_ref = dqn_forward_reference(params, x)
    err = float(jnp.max(jnp.abs(q - q_ref)))
    assert err < 2e-2, f"mismatch vs reference: max abs err = {err}"

    print("KERNEL_OK")
</pallas_src>

<mosaic_0001>
module attributes {stable_mosaic.version = 11 : i64} {
  func.func @_dqn_fused_kernel(%arg0: memref<16x8x64xf32, #tpu.memory_space<vmem>>, %arg1: memref<3x64x112xf32, #tpu.memory_space<vmem>>, %arg2: memref<1x112xf32, #tpu.memory_space<vmem>>, %arg3: memref<3x112x96xf32, #tpu.memory_space<vmem>>, %arg4: memref<1x96xf32, #tpu.memory_space<vmem>>, %arg5: memref<3x96x64xf32, #tpu.memory_space<vmem>>, %arg6: memref<1x64xf32, #tpu.memory_space<vmem>>, %arg7: memref<64x512xf32, #tpu.memory_space<vmem>>, %arg8: memref<1x512xf32, #tpu.memory_space<vmem>>, %arg9: memref<512x128xf32, #tpu.memory_space<vmem>>, %arg10: memref<1x128xf32, #tpu.memory_space<vmem>>, %arg11: memref<8x128xf32, #tpu.memory_space<vmem>>) attributes {dimension_semantics = [], scalar_prefetch = 0 : i64, scratch_operands = 0 : i64, tpu.core_type = #tpu.core_type<tc>} {
    %c0 = arith.constant 0 : index
    %c0_0 = arith.constant 0 : index
    %0 = vector.load %arg2[%c0, %c0_0] : memref<1x112xf32, #tpu.memory_space<vmem>>, vector<1x112xf32>
    %c0_1 = arith.constant 0 : index
    %c0_2 = arith.constant 0 : index
    %c0_3 = arith.constant 0 : index
    %1 = vector.load %arg0[%c0_1, %c0_2, %c0_3] : memref<16x8x64xf32, #tpu.memory_space<vmem>>, vector<1x8x64xf32>
    %2 = vector.shape_cast %1 : vector<1x8x64xf32> to vector<8x64xf32>
    %c0_4 = arith.constant 0 : index
    %c0_5 = arith.constant 0 : index
    %c0_6 = arith.constant 0 : index
    %3 = vector.load %arg1[%c0_4, %c0_5, %c0_6] : memref<3x64x112xf32, #tpu.memory_space<vmem>>, vector<1x64x112xf32>
    %4 = vector.shape_cast %3 : vector<1x64x112xf32> to vector<64x112xf32>
    %cst = arith.constant dense<0.000000e+00> : vector<8x112xf32>
    %5 = tpu.matmul %2, %4, %cst {dimension_numbers = #tpu.dot_dimension_numbers<[1], [0], [0], [1], [0, 0, 1, 1], [], []>} : vector<8x64xf32>, vector<64x112xf32>, vector<8x112xf32> -> vector<8x112xf32>
    %6 = vector.broadcast %0 : vector<1x112xf32> to vector<8x112xf32>
    %7 = arith.addf %6, %5 : vector<8x112xf32>
    %c1 = arith.constant 1 : index
    %c0_7 = arith.constant 0 : index
    %c0_8 = arith.constant 0 : index
    %8 = vector.load %arg0[%c1, %c0_7, %c0_8] : memref<16x8x64xf32, #tpu.memory_space<vmem>>, vector<1x8x64xf32>
    %9 = vector.shape_cast %8 : vector<1x8x64xf32> to vector<8x64xf32>
    %c1_9 = arith.constant 1 : index
    %c0_10 = arith.constant 0 : index
    %c0_11 = arith.constant 0 : index
    %10 = vector.load %arg1[%c1_9, %c0_10, %c0_11] : memref<3x64x112xf32, #tpu.memory_space<vmem>>, vector<1x64x112xf32>
    %11 = vector.shape_cast %10 : vector<1x64x112xf32> to vector<64x112xf32>
    %cst_12 = arith.constant dense<0.000000e+00> : vector<8x112xf32>
    %12 = tpu.matmul %9, %11, %cst_12 {dimension_numbers = #tpu.dot_dimension_numbers<[1], [0], [0], [1], [0, 0, 1, 1], [], []>} : vector<8x64xf32>, vector<64x112xf32>, vector<8x112xf32> -> vector<8x112xf32>
    %13 = arith.addf %7, %12 : vector<8x112xf32>
    %c2 = arith.constant 2 : index
    %c0_13 = arith.constant 0 : index
    %c0_14 = arith.constant 0 : index
    %14 = vector.load %arg0[%c2, %c0_13, %c0_14] : memref<16x8x64xf32, #tpu.memory_space<vmem>>, vector<1x8x64xf32>
    %15 = vector.shape_cast %14 : vector<1x8x64xf32> to vector<8x64xf32>
    %c2_15 = arith.constant 2 : index
    %c0_16 = arith.constant 0 : index
    %c0_17 = arith.constant 0 : index
    %16 = vector.load %arg1[%c2_15, %c0_16, %c0_17] : memref<3x64x112xf32, #tpu.memory_space<vmem>>, vector<1x64x112xf32>
    %17 = vector.shape_cast %16 : vector<1x64x112xf32> to vector<64x112xf32>
    %cst_18 = arith.constant dense<0.000000e+00> : vector<8x112xf32>
    %18 = tpu.matmul %15, %17, %cst_18 {dimension_numbers = #tpu.dot_dimension_numbers<[1], [0], [0], [1], [0, 0, 1, 1], [], []>} : vector<8x64xf32>, vector<64x112xf32>, vector<8x112xf32> -> vector<8x112xf32>
    %19 = arith.addf %13, %18 : vector<8x112xf32>
    %cst_19 = arith.constant 0.000000e+00 : f32
    %20 = vector.broadcast %cst_19 : f32 to vector<8x112xf32>
    %21 = arith.maximumf %19, %20 : vector<8x112xf32>
    %c2_20 = arith.constant 2 : index
    %c0_21 = arith.constant 0 : index
    %c0_22 = arith.constant 0 : index
    %22 = vector.load %arg0[%c2_20, %c0_21, %c0_22] : memref<16x8x64xf32, #tpu.memory_space<vmem>>, vector<1x8x64xf32>
    %23 = vector.shape_cast %22 : vector<1x8x64xf32> to vector<8x64xf32>
    %c0_23 = arith.constant 0 : index
    %c0_24 = arith.constant 0 : index
    %c0_25 = arith.constant 0 : index
    %24 = vector.load %arg1[%c0_23, %c0_24, %c0_25] : memref<3x64x112xf32, #tpu.memory_space<vmem>>, vector<1x64x112xf32>
    %25 = vector.shape_cast %24 : vector<1x64x112xf32> to vector<64x112xf32>
    %cst_26 = arith.constant dense<0.000000e+00> : vector<8x112xf32>
    %26 = tpu.matmul %23, %25, %cst_26 {dimension_numbers = #tpu.dot_dimension_numbers<[1], [0], [0], [1], [0, 0, 1, 1], [], []>} : vector<8x64xf32>, vector<64x112xf32>, vector<8x112xf32> -> vector<8x112xf32>
    %27 = vector.broadcast %0 : vector<1x112xf32> to vector<8x112xf32>
    %28 = arith.addf %27, %26 : vector<8x112xf32>
    %c3 = arith.constant 3 : index
    %c0_27 = arith.constant 0 : index
    %c0_28 = arith.constant 0 : index
    %29 = vector.load %arg0[%c3, %c0_27, %c0_28] : memref<16x8x64xf32, #tpu.memory_space<vmem>>, vector<1x8x64xf32>
    %30 = vector.shape_cast %29 : vector<1x8x64xf32> to vector<8x64xf32>
    %c1_29 = arith.constant 1 : index
    %c0_30 = arith.constant 0 : index
    %c0_31 = arith.constant 0 : index
    %31 = vector.load %arg1[%c1_29, %c0_30, %c0_31] : memref<3x64x112xf32, #tpu.memory_space<vmem>>, vector<1x64x112xf32>
    %32 = vector.shape_cast %31 : vector<1x64x112xf32> to vector<64x112xf32>
    %cst_32 = arith.constant dense<0.000000e+00> : vector<8x112xf32>
    %33 = tpu.matmul %30, %32, %cst_32 {dimension_numbers = #tpu.dot_dimension_numbers<[1], [0], [0], [1], [0, 0, 1, 1], [], []>} : vector<8x64xf32>, vector<64x112xf32>, vector<8x112xf32> -> vector<8x112xf32>
    %34 = arith.addf %28, %33 : vector<8x112xf32>
    %c4 = arith.constant 4 : index
    %c0_33 = arith.constant 0 : index
    %c0_34 = arith.constant 0 : index
    %35 = vector.load %arg0[%c4, %c0_33, %c0_34] : memref<16x8x64xf32, #tpu.memory_space<vmem>>, vector<1x8x64xf32>
    %36 = vector.shape_cast %35 : vector<1x8x64xf32> to vector<8x64xf32>
    %c2_35 = arith.constant 2 : index
    %c0_36 = arith.constant 0 : index
    %c0_37 = arith.constant 0 : index
    %37 = vector.load %arg1[%c2_35, %c0_36, %c0_37] : memref<3x64x112xf32, #tpu.memory_space<vmem>>, vector<1x64x112xf32>
    %38 = vector.shape_cast %37 : vector<1x64x112xf32> to vector<64x112xf32>
    %cst_38 = arith.constant dense<0.000000e+00> : vector<8x112xf32>
    %39 = tpu.matmul %36, %38, %cst_38 {dimension_numbers = #tpu.dot_dimension_numbers<[1], [0], [0], [1], [0, 0, 1, 1], [], []>} : vector<8x64xf32>, vector<64x112xf32>, vector<8x112xf32> -> vector<8x112xf32>
    %40 = arith.addf %34, %39 : vector<8x112xf32>
    %cst_39 = arith.constant 0.000000e+00 : f32
    %41 = vector.broadcast %cst_39 : f32 to vector<8x112xf32>
    %42 = arith.maximumf %40, %41 : vector<8x112xf32>
    %c4_40 = arith.constant 4 : index
    %c0_41 = arith.constant 0 : index
    %c0_42 = arith.constant 0 : index
    %43 = vector.load %arg0[%c4_40, %c0_41, %c0_42] : memref<16x8x64xf32, #tpu.memory_space<vmem>>, vector<1x8x64xf32>
    %44 = vector.shape_cast %43 : vector<1x8x64xf32> to vector<8x64xf32>
    %c0_43 = arith.constant 0 : index
    %c0_44 = arith.constant 0 : index
    %c0_45 = arith.constant 0 : index
    %45 = vector.load %arg1[%c0_43, %c0_44, %c0_45] : memref<3x64x112xf32, #tpu.memory_space<vmem>>, vector<1x64x112xf32>
    %46 = vector.shape_cast %45 : vector<1x64x112xf32> to vector<64x112xf32>
    %cst_46 = arith.constant dense<0.000000e+00> : vector<8x112xf32>
    %47 = tpu.matmul %44, %46, %cst_46 {dimension_numbers = #tpu.dot_dimension_numbers<[1], [0], [0], [1], [0, 0, 1, 1], [], []>} : vector<8x64xf32>, vector<64x112xf32>, vector<8x112xf32> -> vector<8x112xf32>
    %48 = vector.broadcast %0 : vector<1x112xf32> to vector<8x112xf32>
    %49 = arith.addf %48, %47 : vector<8x112xf32>
    %c5 = arith.constant 5 : index
    %c0_47 = arith.constant 0 : index
    %c0_48 = arith.constant 0 : index
    %50 = vector.load %arg0[%c5, %c0_47, %c0_48] : memref<16x8x64xf32, #tpu.memory_space<vmem>>, vector<1x8x64xf32>
    %51 = vector.shape_cast %50 : vector<1x8x64xf32> to vector<8x64xf32>
    %c1_49 = arith.constant 1 : index
    %c0_50 = arith.constant 0 : index
    %c0_51 = arith.constant 0 : index
    %52 = vector.load %arg1[%c1_49, %c0_50, %c0_51] : memref<3x64x112xf32, #tpu.memory_space<vmem>>, vector<1x64x112xf32>
    %53 = vector.shape_cast %52 : vector<1x64x112xf32> to vector<64x112xf32>
    %cst_52 = arith.constant dense<0.000000e+00> : vector<8x112xf32>
    %54 = tpu.matmul %51, %53, %cst_52 {dimension_numbers = #tpu.dot_dimension_numbers<[1], [0], [0], [1], [0, 0, 1, 1], [], []>} : vector<8x64xf32>, vector<64x112xf32>, vector<8x112xf32> -> vector<8x112xf32>
    %55 = arith.addf %49, %54 : vector<8x112xf32>
    %c6 = arith.constant 6 : index
    %c0_53 = arith.constant 0 : index
    %c0_54 = arith.constant 0 : index
    %56 = vector.load %arg0[%c6, %c0_53, %c0_54] : memref<16x8x64xf32, #tpu.memory_space<vmem>>, vector<1x8x64xf32>
    %57 = vector.shape_cast %56 : vector<1x8x64xf32> to vector<8x64xf32>
    %c2_55 = arith.constant 2 : index
    %c0_56 = arith.constant 0 : index
    %c0_57 = arith.constant 0 : index
    %58 = vector.load %arg1[%c2_55, %c0_56, %c0_57] : memref<3x64x112xf32, #tpu.memory_space<vmem>>, vector<1x64x112xf32>
    %59 = vector.shape_cast %58 : vector<1x64x112xf32> to vector<64x112xf32>
    %cst_58 = arith.constant dense<0.000000e+00> : vector<8x112xf32>
    %60 = tpu.matmul %57, %59, %cst_58 {dimension_numbers = #tpu.dot_dimension_numbers<[1], [0], [0], [1], [0, 0, 1, 1], [], []>} : vector<8x64xf32>, vector<64x112xf32>, vector<8x112xf32> -> vector<8x112xf32>
    %61 = arith.addf %55, %60 : vector<8x112xf32>
    %cst_59 = arith.constant 0.000000e+00 : f32
    %62 = vector.broadcast %cst_59 : f32 to vector<8x112xf32>
    %63 = arith.maximumf %61, %62 : vector<8x112xf32>
    %c6_60 = arith.constant 6 : index
    %c0_61 = arith.constant 0 : index
    %c0_62 = arith.constant 0 : index
    %64 = vector.load %arg0[%c6_60, %c0_61, %c0_62] : memref<16x8x64xf32, #tpu.memory_space<vmem>>, vector<1x8x64xf32>
    %65 = vector.shape_cast %64 : vector<1x8x64xf32> to vector<8x64xf32>
    %c0_63 = arith.constant 0 : index
    %c0_64 = arith.constant 0 : index
    %c0_65 = arith.constant 0 : index
    %66 = vector.load %arg1[%c0_63, %c0_64, %c0_65] : memref<3x64x112xf32, #tpu.memory_space<vmem>>, vector<1x64x112xf32>
    %67 = vector.shape_cast %66 : vector<1x64x112xf32> to vector<64x112xf32>
    %cst_66 = arith.constant dense<0.000000e+00> : vector<8x112xf32>
    %68 = tpu.matmul %65, %67, %cst_66 {dimension_numbers = #tpu.dot_dimension_numbers<[1], [0], [0], [1], [0, 0, 1, 1], [], []>} : vector<8x64xf32>, vector<64x112xf32>, vector<8x112xf32> -> vector<8x112xf32>
    %69 = vector.broadcast %0 : vector<1x112xf32> to vector<8x112xf32>
    %70 = arith.addf %69, %68 : vector<8x112xf32>
    %c7 = arith.constant 7 : index
    %c0_67 = arith.constant 0 : index
    %c0_68 = arith.constant 0 : index
    %71 = vector.load %arg0[%c7, %c0_67, %c0_68] : memref<16x8x64xf32, #tpu.memory_space<vmem>>, vector<1x8x64xf32>
    %72 = vector.shape_cast %71 : vector<1x8x64xf32> to vector<8x64xf32>
    %c1_69 = arith.constant 1 : index
    %c0_70 = arith.constant 0 : index
    %c0_71 = arith.constant 0 : index
    %73 = vector.load %arg1[%c1_69, %c0_70, %c0_71] : memref<3x64x112xf32, #tpu.memory_space<vmem>>, vector<1x64x112xf32>
    %74 = vector.shape_cast %73 : vector<1x64x112xf32> to vector<64x112xf32>
    %cst_72 = arith.constant dense<0.000000e+00> : vector<8x112xf32>
    %75 = tpu.matmul %72, %74, %cst_72 {dimension_numbers = #tpu.dot_dimension_numbers<[1], [0], [0], [1], [0, 0, 1, 1], [], []>} : vector<8x64xf32>, vector<64x112xf32>, vector<8x112xf32> -> vector<8x112xf32>
    %76 = arith.addf %70, %75 : vector<8x112xf32>
    %c8 = arith.constant 8 : index
    %c0_73 = arith.constant 0 : index
    %c0_74 = arith.constant 0 : index
    %77 = vector.load %arg0[%c8, %c0_73, %c0_74] : memref<16x8x64xf32, #tpu.memory_space<vmem>>, vector<1x8x64xf32>
    %78 = vector.shape_cast %77 : vector<1x8x64xf32> to vector<8x64xf32>
    %c2_75 = arith.constant 2 : index
    %c0_76 = arith.constant 0 : index
    %c0_77 = arith.constant 0 : index
    %79 = vector.load %arg1[%c2_75, %c0_76, %c0_77] : memref<3x64x112xf32, #tpu.memory_space<vmem>>, vector<1x64x112xf32>
    %80 = vector.shape_cast %79 : vector<1x64x112xf32> to vector<64x112xf32>
    %cst_78 = arith.constant dense<0.000000e+00> : vector<8x112xf32>
    %81 = tpu.matmul %78, %80, %cst_78 {dimension_numbers = #tpu.dot_dimension_numbers<[1], [0], [0], [1], [0, 0, 1, 1], [], []>} : vector<8x64xf32>, vector<64x112xf32>, vector<8x112xf32> -> vector<8x112xf32>
    %82 = arith.addf %76, %81 : vector<8x112xf32>
    %cst_79 = arith.constant 0.000000e+00 : f32
    %83 = vector.broadcast %cst_79 : f32 to vector<8x112xf32>
    %84 = arith.maximumf %82, %83 : vector<8x112xf32>
    %c8_80 = arith.constant 8 : index
    %c0_81 = arith.constant 0 : index
    %c0_82 = arith.constant 0 : index
    %85 = vector.load %arg0[%c8_80, %c0_81, %c0_82] : memref<16x8x64xf32, #tpu.memory_space<vmem>>, vector<1x8x64xf32>
    %86 = vector.shape_cast %85 : vector<1x8x64xf32> to vector<8x64xf32>
    %c0_83 = arith.constant 0 : index
    %c0_84 = arith.constant 0 : index
    %c0_85 = arith.constant 0 : index
    %87 = vector.load %arg1[%c0_83, %c0_84, %c0_85] : memref<3x64x112xf32, #tpu.memory_space<vmem>>, vector<1x64x112xf32>
    %88 = vector.shape_cast %87 : vector<1x64x112xf32> to vector<64x112xf32>
    %cst_86 = arith.constant dense<0.000000e+00> : vector<8x112xf32>
    %89 = tpu.matmul %86, %88, %cst_86 {dimension_numbers = #tpu.dot_dimension_numbers<[1], [0], [0], [1], [0, 0, 1, 1], [], []>} : vector<8x64xf32>, vector<64x112xf32>, vector<8x112xf32> -> vector<8x112xf32>
    %90 = vector.broadcast %0 : vector<1x112xf32> to vector<8x112xf32>
    %91 = arith.addf %90, %89 : vector<8x112xf32>
    %c9 = arith.constant 9 : index
    %c0_87 = arith.constant 0 : index
    %c0_88 = arith.constant 0 : index
    %92 = vector.load %arg0[%c9, %c0_87, %c0_88] : memref<16x8x64xf32, #tpu.memory_space<vmem>>, vector<1x8x64xf32>
    %93 = vector.shape_cast %92 : vector<1x8x64xf32> to vector<8x64xf32>
    %c1_89 = arith.constant 1 : index
    %c0_90 = arith.constant 0 : index
    %c0_91 = arith.constant 0 : index
    %94 = vector.load %arg1[%c1_89, %c0_90, %c0_91] : memref<3x64x112xf32, #tpu.memory_space<vmem>>, vector<1x64x112xf32>
    %95 = vector.shape_cast %94 : vector<1x64x112xf32> to vector<64x112xf32>
    %cst_92 = arith.constant dense<0.000000e+00> : vector<8x112xf32>
    %96 = tpu.matmul %93, %95, %cst_92 {dimension_numbers = #tpu.dot_dimension_numbers<[1], [0], [0], [1], [0, 0, 1, 1], [], []>} : vector<8x64xf32>, vector<64x112xf32>, vector<8x112xf32> -> vector<8x112xf32>
    %97 = arith.addf %91, %96 : vector<8x112xf32>
    %c10 = arith.constant 10 : index
    %c0_93 = arith.constant 0 : index
    %c0_94 = arith.constant 0 : index
    %98 = vector.load %arg0[%c10, %c0_93, %c0_94] : memref<16x8x64xf32, #tpu.memory_space<vmem>>, vector<1x8x64xf32>
    %99 = vector.shape_cast %98 : vector<1x8x64xf32> to vector<8x64xf32>
    %c2_95 = arith.constant 2 : index
    %c0_96 = arith.constant 0 : index
    %c0_97 = arith.constant 0 : index
    %100 = vector.load %arg1[%c2_95, %c0_96, %c0_97] : memref<3x64x112xf32, #tpu.memory_space<vmem>>, vector<1x64x112xf32>
    %101 = vector.shape_cast %100 : vector<1x64x112xf32> to vector<64x112xf32>
    %cst_98 = arith.constant dense<0.000000e+00> : vector<8x112xf32>
    %102 = tpu.matmul %99, %101, %cst_98 {dimension_numbers = #tpu.dot_dimension_numbers<[1], [0], [0], [1], [0, 0, 1, 1], [], []>} : vector<8x64xf32>, vector<64x112xf32>, vector<8x112xf32> -> vector<8x112xf32>
    %103 = arith.addf %97, %102 : vector<8x112xf32>
    %cst_99 = arith.constant 0.000000e+00 : f32
    %104 = vector.broadcast %cst_99 : f32 to vector<8x112xf32>
    %105 = arith.maximumf %103, %104 : vector<8x112xf32>
    %c10_100 = arith.constant 10 : index
    %c0_101 = arith.constant 0 : index
    %c0_102 = arith.constant 0 : index
    %106 = vector.load %arg0[%c10_100, %c0_101, %c0_102] : memref<16x8x64xf32, #tpu.memory_space<vmem>>, vector<1x8x64xf32>
    %107 = vector.shape_cast %106 : vector<1x8x64xf32> to vector<8x64xf32>
    %c0_103 = arith.constant 0 : index
    %c0_104 = arith.constant 0 : index
    %c0_105 = arith.constant 0 : index
    %108 = vector.load %arg1[%c0_103, %c0_104, %c0_105] : memref<3x64x112xf32, #tpu.memory_space<vmem>>, vector<1x64x112xf32>
    %109 = vector.shape_cast %108 : vector<1x64x112xf32> to vector<64x112xf32>
    %cst_106 = arith.constant dense<0.000000e+00> : vector<8x112xf32>
    %110 = tpu.matmul %107, %109, %cst_106 {dimension_numbers = #tpu.dot_dimension_numbers<[1], [0], [0], [1], [0, 0, 1, 1], [], []>} : vector<8x64xf32>, vector<64x112xf32>, vector<8x112xf32> -> vector<8x112xf32>
    %111 = vector.broadcast %0 : vector<1x112xf32> to vector<8x112xf32>
    %112 = arith.addf %111, %110 : vector<8x112xf32>
    %c11 = arith.constant 11 : index
    %c0_107 = arith.constant 0 : index
    %c0_108 = arith.constant 0 : index
    %113 = vector.load %arg0[%c11, %c0_107, %c0_108] : memref<16x8x64xf32, #tpu.memory_space<vmem>>, vector<1x8x64xf32>
    %114 = vector.shape_cast %113 : vector<1x8x64xf32> to vector<8x64xf32>
    %c1_109 = arith.constant 1 : index
    %c0_110 = arith.constant 0 : index
    %c0_111 = arith.constant 0 : index
    %115 = vector.load %arg1[%c1_109, %c0_110, %c0_111] : memref<3x64x112xf32, #tpu.memory_space<vmem>>, vector<1x64x112xf32>
    %116 = vector.shape_cast %115 : vector<1x64x112xf32> to vector<64x112xf32>
    %cst_112 = arith.constant dense<0.000000e+00> : vector<8x112xf32>
    %117 = tpu.matmul %114, %116, %cst_112 {dimension_numbers = #tpu.dot_dimension_numbers<[1], [0], [0], [1], [0, 0, 1, 1], [], []>} : vector<8x64xf32>, vector<64x112xf32>, vector<8x112xf32> -> vector<8x112xf32>
    %118 = arith.addf %112, %117 : vector<8x112xf32>
    %c12 = arith.constant 12 : index
    %c0_113 = arith.constant 0 : index
    %c0_114 = arith.constant 0 : index
    %119 = vector.load %arg0[%c12, %c0_113, %c0_114] : memref<16x8x64xf32, #tpu.memory_space<vmem>>, vector<1x8x64xf32>
    %120 = vector.shape_cast %119 : vector<1x8x64xf32> to vector<8x64xf32>
    %c2_115 = arith.constant 2 : index
    %c0_116 = arith.constant 0 : index
    %c0_117 = arith.constant 0 : index
    %121 = vector.load %arg1[%c2_115, %c0_116, %c0_117] : memref<3x64x112xf32, #tpu.memory_space<vmem>>, vector<1x64x112xf32>
    %122 = vector.shape_cast %121 : vector<1x64x112xf32> to vector<64x112xf32>
    %cst_118 = arith.constant dense<0.000000e+00> : vector<8x112xf32>
    %123 = tpu.matmul %120, %122, %cst_118 {dimension_numbers = #tpu.dot_dimension_numbers<[1], [0], [0], [1], [0, 0, 1, 1], [], []>} : vector<8x64xf32>, vector<64x112xf32>, vector<8x112xf32> -> vector<8x112xf32>
    %124 = arith.addf %118, %123 : vector<8x112xf32>
    %cst_119 = arith.constant 0.000000e+00 : f32
    %125 = vector.broadcast %cst_119 : f32 to vector<8x112xf32>
    %126 = arith.maximumf %124, %125 : vector<8x112xf32>
    %c12_120 = arith.constant 12 : index
    %c0_121 = arith.constant 0 : index
    %c0_122 = arith.constant 0 : index
    %127 = vector.load %arg0[%c12_120, %c0_121, %c0_122] : memref<16x8x64xf32, #tpu.memory_space<vmem>>, vector<1x8x64xf32>
    %128 = vector.shape_cast %127 : vector<1x8x64xf32> to vector<8x64xf32>
    %c0_123 = arith.constant 0 : index
    %c0_124 = arith.constant 0 : index
    %c0_125 = arith.constant 0 : index
    %129 = vector.load %arg1[%c0_123, %c0_124, %c0_125] : memref<3x64x112xf32, #tpu.memory_space<vmem>>, vector<1x64x112xf32>
    %130 = vector.shape_cast %129 : vector<1x64x112xf32> to vector<64x112xf32>
    %cst_126 = arith.constant dense<0.000000e+00> : vector<8x112xf32>
    %131 = tpu.matmul %128, %130, %cst_126 {dimension_numbers = #tpu.dot_dimension_numbers<[1], [0], [0], [1], [0, 0, 1, 1], [], []>} : vector<8x64xf32>, vector<64x112xf32>, vector<8x112xf32> -> vector<8x112xf32>
    %132 = vector.broadcast %0 : vector<1x112xf32> to vector<8x112xf32>
    %133 = arith.addf %132, %131 : vector<8x112xf32>
    %c13 = arith.constant 13 : index
    %c0_127 = arith.constant 0 : index
    %c0_128 = arith.constant 0 : index
    %134 = vector.load %arg0[%c13, %c0_127, %c0_128] : memref<16x8x64xf32, #tpu.memory_space<vmem>>, vector<1x8x64xf32>
    %135 = vector.shape_cast %134 : vector<1x8x64xf32> to vector<8x64xf32>
    %c1_129 = arith.constant 1 : index
    %c0_130 = arith.constant 0 : index
    %c0_131 = arith.constant 0 : index
    %136 = vector.load %arg1[%c1_129, %c0_130, %c0_131] : memref<3x64x112xf32, #tpu.memory_space<vmem>>, vector<1x64x112xf32>
    %137 = vector.shape_cast %136 : vector<1x64x112xf32> to vector<64x112xf32>
    %cst_132 = arith.constant dense<0.000000e+00> : vector<8x112xf32>
    %138 = tpu.matmul %135, %137, %cst_132 {dimension_numbers = #tpu.dot_dimension_numbers<[1], [0], [0], [1], [0, 0, 1, 1], [], []>} : vector<8x64xf32>, vector<64x112xf32>, vector<8x112xf32> -> vector<8x112xf32>
    %139 = arith.addf %133, %138 : vector<8x112xf32>
    %c14 = arith.constant 14 : index
    %c0_133 = arith.constant 0 : index
    %c0_134 = arith.constant 0 : index
    %140 = vector.load %arg0[%c14, %c0_133, %c0_134] : memref<16x8x64xf32, #tpu.memory_space<vmem>>, vector<1x8x64xf32>
    %141 = vector.shape_cast %140 : vector<1x8x64xf32> to vector<8x64xf32>
    %c2_135 = arith.constant 2 : index
    %c0_136 = arith.constant 0 : index
    %c0_137 = arith.constant 0 : index
    %142 = vector.load %arg1[%c2_135, %c0_136, %c0_137] : memref<3x64x112xf32, #tpu.memory_space<vmem>>, vector<1x64x112xf32>
    %143 = vector.shape_cast %142 : vector<1x64x112xf32> to vector<64x112xf32>
    %cst_138 = arith.constant dense<0.000000e+00> : vector<8x112xf32>
    %144 = tpu.matmul %141, %143, %cst_138 {dimension_numbers = #tpu.dot_dimension_numbers<[1], [0], [0], [1], [0, 0, 1, 1], [], []>} : vector<8x64xf32>, vector<64x112xf32>, vector<8x112xf32> -> vector<8x112xf32>
    %145 = arith.addf %139, %144 : vector<8x112xf32>
    %cst_139 = arith.constant 0.000000e+00 : f32
    %146 = vector.broadcast %cst_139 : f32 to vector<8x112xf32>
    %147 = arith.maximumf %145, %146 : vector<8x112xf32>
    %c0_140 = arith.constant 0 : index
    %c0_141 = arith.constant 0 : index
    %148 = vector.load %arg4[%c0_140, %c0_141] : memref<1x96xf32, #tpu.memory_space<vmem>>, vector<1x96xf32>
    %c0_142 = arith.constant 0 : index
    %c0_143 = arith.constant 0 : index
    %c0_144 = arith.constant 0 : index
    %149 = vector.load %arg3[%c0_142, %c0_143, %c0_144] : memref<3x112x96xf32, #tpu.memory_space<vmem>>, vector<1x112x96xf32>
    %150 = vector.shape_cast %149 : vector<1x112x96xf32> to vector<112x96xf32>
    %cst_145 = arith.constant dense<0.000000e+00> : vector<8x96xf32>
    %151 = tpu.matmul %21, %150, %cst_145 {dimension_numbers = #tpu.dot_dimension_numbers<[1], [0], [0], [1], [0, 0, 1, 1], [], []>} : vector<8x112xf32>, vector<112x96xf32>, vector<8x96xf32> -> vector<8x96xf32>
    %152 = vector.broadcast %148 : vector<1x96xf32> to vector<8x96xf32>
    %153 = arith.addf %152, %151 : vector<8x96xf32>
    %c1_146 = arith.constant 1 : index
    %c0_147 = arith.constant 0 : index
    %c0_148 = arith.constant 0 : index
    %154 = vector.load %arg3[%c1_146, %c0_147, %c0_148] : memref<3x112x96xf32, #tpu.memory_space<vmem>>, vector<1x112x96xf32>
    %155 = vector.shape_cast %154 : vector<1x112x96xf32> to vector<112x96xf32>
    %cst_149 = arith.constant dense<0.000000e+00> : vector<8x96xf32>
    %156 = tpu.matmul %42, %155, %cst_149 {dimension_numbers = #tpu.dot_dimension_numbers<[1], [0], [0], [1], [0, 0, 1, 1], [], []>} : vector<8x112xf32>, vector<112x96xf32>, vector<8x96xf32> -> vector<8x96xf32>
    %157 = arith.addf %153, %156 : vector<8x96xf32>
    %c2_150 = arith.constant 2 : index
    %c0_151 = arith.constant 0 : index
    %c0_152 = arith.constant 0 : index
    %158 = vector.load %arg3[%c2_150, %c0_151, %c0_152] : memref<3x112x96xf32, #tpu.memory_space<vmem>>, vector<1x112x96xf32>
    %159 = vector.shape_cast %158 : vector<1x112x96xf32> to vector<112x96xf32>
    %cst_153 = arith.constant dense<0.000000e+00> : vector<8x96xf32>
    %160 = tpu.matmul %63, %159, %cst_153 {dimension_numbers = #tpu.dot_dimension_numbers<[1], [0], [0], [1], [0, 0, 1, 1], [], []>} : vector<8x112xf32>, vector<112x96xf32>, vector<8x96xf32> -> vector<8x96xf32>
    %161 = arith.addf %157, %160 : vector<8x96xf32>
    %cst_154 = arith.constant 0.000000e+00 : f32
    %162 = vector.broadcast %cst_154 : f32 to vector<8x96xf32>
    %163 = arith.maximumf %161, %162 : vector<8x96xf32>
    %c0_155 = arith.constant 0 : index
    %c0_156 = arith.constant 0 : index
    %c0_157 = arith.constant 0 : index
    %164 = vector.load %arg3[%c0_155, %c0_156, %c0_157] : memref<3x112x96xf32, #tpu.memory_space<vmem>>, vector<1x112x96xf32>
    %165 = vector.shape_cast %164 : vector<1x112x96xf32> to vector<112x96xf32>
    %cst_158 = arith.constant dense<0.000000e+00> : vector<8x96xf32>
    %166 = tpu.matmul %63, %165, %cst_158 {dimension_numbers = #tpu.dot_dimension_numbers<[1], [0], [0], [1], [0, 0, 1, 1], [], []>} : vector<8x112xf32>, vector<112x96xf32>, vector<8x96xf32> -> vector<8x96xf32>
    %167 = vector.broadcast %148 : vector<1x96xf32> to vector<8x96xf32>
    %168 = arith.addf %167, %166 : vector<8x96xf32>
    %c1_159 = arith.constant 1 : index
    %c0_160 = arith.constant 0 : index
    %c0_161 = arith.constant 0 : index
    %169 = vector.load %arg3[%c1_159, %c0_160, %c0_161] : memref<3x112x96xf32, #tpu.memory_space<vmem>>, vector<1x112x96xf32>
    %170 = vector.shape_cast %169 : vector<1x112x96xf32> to vector<112x96xf32>
    %cst_162 = arith.constant dense<0.000000e+00> : vector<8x96xf32>
    %171 = tpu.matmul %84, %170, %cst_162 {dimension_numbers = #tpu.dot_dimension_numbers<[1], [0], [0], [1], [0, 0, 1, 1], [], []>} : vector<8x112xf32>, vector<112x96xf32>, vector<8x96xf32> -> vector<8x96xf32>
    %172 = arith.addf %168, %171 : vector<8x96xf32>
    %c2_163 = arith.constant 2 : index
    %c0_164 = arith.constant 0 : index
    %c0_165 = arith.constant 0 : index
    %173 = vector.load %arg3[%c2_163, %c0_164, %c0_165] : memref<3x112x96xf32, #tpu.memory_space<vmem>>, vector<1x112x96xf32>
    %174 = vector.shape_cast %173 : vector<1x112x96xf32> to vector<112x96xf32>
    %cst_166 = arith.constant dense<0.000000e+00> : vector<8x96xf32>
    %175 = tpu.matmul %105, %174, %cst_166 {dimension_numbers = #tpu.dot_dimension_numbers<[1], [0], [0], [1], [0, 0, 1, 1], [], []>} : vector<8x112xf32>, vector<112x96xf32>, vector<8x96xf32> -> vector<8x96xf32>
    %176 = arith.addf %172, %175 : vector<8x96xf32>
    %cst_167 = arith.constant 0.000000e+00 : f32
    %177 = vector.broadcast %cst_167 : f32 to vector<8x96xf32>
    %178 = arith.maximumf %176, %177 : vector<8x96xf32>
    %c0_168 = arith.constant 0 : index
    %c0_169 = arith.constant 0 : index
    %c0_170 = arith.constant 0 : index
    %179 = vector.load %arg3[%c0_168, %c0_169, %c0_170] : memref<3x112x96xf32, #tpu.memory_space<vmem>>, vector<1x112x96xf32>
    %180 = vector.shape_cast %179 : vector<1x112x96xf32> to vector<112x96xf32>
    %cst_171 = arith.constant dense<0.000000e+00> : vector<8x96xf32>
    %181 = tpu.matmul %105, %180, %cst_171 {dimension_numbers = #tpu.dot_dimension_numbers<[1], [0], [0], [1], [0, 0, 1, 1], [], []>} : vector<8x112xf32>, vector<112x96xf32>, vector<8x96xf32> -> vector<8x96xf32>
    %182 = vector.broadcast %148 : vector<1x96xf32> to vector<8x96xf32>
    %183 = arith.addf %182, %181 : vector<8x96xf32>
    %c1_172 = arith.constant 1 : index
    %c0_173 = arith.constant 0 : index
    %c0_174 = arith.constant 0 : index
    %184 = vector.load %arg3[%c1_172, %c0_173, %c0_174] : memref<3x112x96xf32, #tpu.memory_space<vmem>>, vector<1x112x96xf32>
    %185 = vector.shape_cast %184 : vector<1x112x96xf32> to vector<112x96xf32>
    %cst_175 = arith.constant dense<0.000000e+00> : vector<8x96xf32>
    %186 = tpu.matmul %126, %185, %cst_175 {dimension_numbers = #tpu.dot_dimension_numbers<[1], [0], [0], [1], [0, 0, 1, 1], [], []>} : vector<8x112xf32>, vector<112x96xf32>, vector<8x96xf32> -> vector<8x96xf32>
    %187 = arith.addf %183, %186 : vector<8x96xf32>
    %c2_176 = arith.constant 2 : index
    %c0_177 = arith.constant 0 : index
    %c0_178 = arith.constant 0 : index
    %188 = vector.load %arg3[%c2_176, %c0_177, %c0_178] : memref<3x112x96xf32, #tpu.memory_space<vmem>>, vector<1x112x96xf32>
    %189 = vector.shape_cast %188 : vector<1x112x96xf32> to vector<112x96xf32>
    %cst_179 = arith.constant dense<0.000000e+00> : vector<8x96xf32>
    %190 = tpu.matmul %147, %189, %cst_179 {dimension_numbers = #tpu.dot_dimension_numbers<[1], [0], [0], [1], [0, 0, 1, 1], [], []>} : vector<8x112xf32>, vector<112x96xf32>, vector<8x96xf32> -> vector<8x96xf32>
    %191 = arith.addf %187, %190 : vector<8x96xf32>
    %cst_180 = arith.constant 0.000000e+00 : f32
    %192 = vector.broadcast %cst_180 : f32 to vector<8x96xf32>
    %193 = arith.maximumf %191, %192 : vector<8x96xf32>
    %c0_181 = arith.constant 0 : index
    %c0_182 = arith.constant 0 : index
    %194 = vector.load %arg6[%c0_181, %c0_182] : memref<1x64xf32, #tpu.memory_space<vmem>>, vector<1x64xf32>
    %c0_183 = arith.constant 0 : index
    %c0_184 = arith.constant 0 : index
    %c0_185 = arith.constant 0 : index
    %195 = vector.load %arg5[%c0_183, %c0_184, %c0_185] : memref<3x96x64xf32, #tpu.memory_space<vmem>>, vector<1x96x64xf32>
    %196 = vector.shape_cast %195 : vector<1x96x64xf32> to vector<96x64xf32>
    %cst_186 = arith.constant dense<0.000000e+00> : vector<8x64xf32>
    %197 = tpu.matmul %163, %196, %cst_186 {dimension_numbers = #tpu.dot_dimension_numbers<[1], [0], [0], [1], [0, 0, 1, 1], [], []>} : vector<8x96xf32>, vector<96x64xf32>, vector<8x64xf32> -> vector<8x64xf32>
    %198 = vector.broadcast %194 : vector<1x64xf32> to vector<8x64xf32>
    %199 = arith.addf %198, %197 : vector<8x64xf32>
    %c1_187 = arith.constant 1 : index
    %c0_188 = arith.constant 0 : index
    %c0_189 = arith.constant 0 : index
    %200 = vector.load %arg5[%c1_187, %c0_188, %c0_189] : memref<3x96x64xf32, #tpu.memory_space<vmem>>, vector<1x96x64xf32>
    %201 = vector.shape_cast %200 : vector<1x96x64xf32> to vector<96x64xf32>
    %cst_190 = arith.constant dense<0.000000e+00> : vector<8x64xf32>
    %202 = tpu.matmul %178, %201, %cst_190 {dimension_numbers = #tpu.dot_dimension_numbers<[1], [0], [0], [1], [0, 0, 1, 1], [], []>} : vector<8x96xf32>, vector<96x64xf32>, vector<8x64xf32> -> vector<8x64xf32>
    %203 = arith.addf %199, %202 : vector<8x64xf32>
    %c2_191 = arith.constant 2 : index
    %c0_192 = arith.constant 0 : index
    %c0_193 = arith.constant 0 : index
    %204 = vector.load %arg5[%c2_191, %c0_192, %c0_193] : memref<3x96x64xf32, #tpu.memory_space<vmem>>, vector<1x96x64xf32>
    %205 = vector.shape_cast %204 : vector<1x96x64xf32> to vector<96x64xf32>
    %cst_194 = arith.constant dense<0.000000e+00> : vector<8x64xf32>
    %206 = tpu.matmul %193, %205, %cst_194 {dimension_numbers = #tpu.dot_dimension_numbers<[1], [0], [0], [1], [0, 0, 1, 1], [], []>} : vector<8x96xf32>, vector<96x64xf32>, vector<8x64xf32> -> vector<8x64xf32>
    %207 = arith.addf %203, %206 : vector<8x64xf32>
    %cst_195 = arith.constant 0.000000e+00 : f32
    %208 = vector.broadcast %cst_195 : f32 to vector<8x64xf32>
    %209 = arith.maximumf %207, %208 : vector<8x64xf32>
    %c0_196 = arith.constant 0 : index
    %c0_197 = arith.constant 0 : index
    %210 = vector.load %arg7[%c0_196, %c0_197] : memref<64x512xf32, #tpu.memory_space<vmem>>, vector<64x512xf32>
    %cst_198 = arith.constant dense<0.000000e+00> : vector<8x512xf32>
    %211 = tpu.matmul %209, %210, %cst_198 {dimension_numbers = #tpu.dot_dimension_numbers<[1], [0], [0], [1], [0, 0, 1, 1], [], []>} : vector<8x64xf32>, vector<64x512xf32>, vector<8x512xf32> -> vector<8x512xf32>
    %c0_199 = arith.constant 0 : index
    %c0_200 = arith.constant 0 : index
    %212 = vector.load %arg8[%c0_199, %c0_200] : memref<1x512xf32, #tpu.memory_space<vmem>>, vector<1x512xf32>
    %213 = vector.broadcast %212 : vector<1x512xf32> to vector<8x512xf32>
    %214 = arith.addf %211, %213 : vector<8x512xf32>
    %cst_201 = arith.constant 0.000000e+00 : f32
    %215 = vector.broadcast %cst_201 : f32 to vector<8x512xf32>
    %216 = arith.maximumf %214, %215 : vector<8x512xf32>
    %c0_202 = arith.constant 0 : index
    %c0_203 = arith.constant 0 : index
    %217 = vector.load %arg9[%c0_202, %c0_203] : memref<512x128xf32, #tpu.memory_space<vmem>>, vector<512x128xf32>
    %cst_204 = arith.constant dense<0.000000e+00> : vector<8x128xf32>
    %218 = tpu.matmul %216, %217, %cst_204 {dimension_numbers = #tpu.dot_dimension_numbers<[1], [0], [0], [1], [0, 0, 1, 1], [], []>} : vector<8x512xf32>, vector<512x128xf32>, vector<8x128xf32> -> vector<8x128xf32>
    %c0_205 = arith.constant 0 : index
    %c0_206 = arith.constant 0 : index
    %219 = vector.load %arg10[%c0_205, %c0_206] : memref<1x128xf32, #tpu.memory_space<vmem>>, vector<1x128xf32>
    %220 = vector.broadcast %219 : vector<1x128xf32> to vector<8x128xf32>
    %221 = arith.addf %218, %220 : vector<8x128xf32>
    %222 = tpu.iota {dimensions = array<i32: 1>} : vector<8x128xi32>
    %c0_i32 = arith.constant 0 : i32
    %223 = vector.broadcast %c0_i32 : i32 to vector<8x128xi32>
    %224 = arith.cmpi eq, %222, %223 : vector<8x128xi32>
    %cst_207 = arith.constant 0.000000e+00 : f32
    %225 = vector.broadcast %cst_207 : f32 to vector<8x128xf32>
    %226 = arith.select %224, %221, %225 : vector<8x128xi1>, vector<8x128xf32>
    %cst_208 = arith.constant dense<0.000000e+00> : vector<8xf32>
    %227 = vector.multi_reduction <add>, %226, %cst_208 [1] : vector<8x128xf32> to vector<8xf32>
    %228 = vector.shape_cast %227 : vector<8xf32> to vector<8x1xf32>
    %c1_i32 = arith.constant 1 : i32
    %229 = vector.broadcast %c1_i32 : i32 to vector<8x128xi32>
    %230 = arith.cmpi sge, %222, %229 : vector<8x128xi32>
    %c6_i32 = arith.constant 6 : i32
    %231 = vector.broadcast %c6_i32 : i32 to vector<8x128xi32>
    %232 = arith.cmpi sle, %222, %231 : vector<8x128xi32>
    %233 = arith.andi %230, %232 : vector<8x128xi1>
    %cst_209 = arith.constant 0.000000e+00 : f32
    %234 = vector.broadcast %cst_209 : f32 to vector<8x128xf32>
    %235 = arith.select %233, %221, %234 : vector<8x128xi1>, vector<8x128xf32>
    %cst_210 = arith.constant dense<0.000000e+00> : vector<8xf32>
    %236 = vector.multi_reduction <add>, %235, %cst_210 [1] : vector<8x128xf32> to vector<8xf32>
    %237 = vector.shape_cast %236 : vector<8xf32> to vector<8x1xf32>
    %cst_211 = arith.constant 0.166666672 : f32
    %238 = vector.broadcast %cst_211 : f32 to vector<8x1xf32>
    %239 = arith.mulf %237, %238 : vector<8x1xf32>
    %240 = vector.broadcast %228 : vector<8x1xf32> to vector<8x128xf32>
    %241 = arith.addf %240, %221 : vector<8x128xf32>
    %242 = vector.broadcast %239 : vector<8x1xf32> to vector<8x128xf32>
    %243 = arith.subf %241, %242 : vector<8x128xf32>
    %c0_212 = arith.constant 0 : index
    %c0_213 = arith.constant 0 : index
    %244 = vector.load %arg11[%c0_212, %c0_213] : memref<8x128xf32, #tpu.memory_space<vmem>>, vector<8x128xf32>
    tpu.vector_store %arg11[%c0_212, %c0_213], %243 {strides = array<i32>} : memref<8x128xf32, #tpu.memory_space<vmem>>, vector<8x128xf32>,
    return
  }
}

</mosaic_0001>

<llo_original>
// kernel: dqn_forward.1
$region0: #{dqn_forward.1}
  #allocation0 [shape = 'u32[]', space=smem, size = 0x4, offset = 0x4, fixed_abs, tag = 'smem constant byte address 0x4 - core index']
  #allocation1 [shape = 'u32[72,128]{1,0:T(1,128)}', space=vmem, size = 0x9000, scoped, tag = 'internal scratch']
  %s0 = inlined_call_operand.vmem [shape: f32[16,8,64], index: 0, kind: input, shape index: {}]
  %s1 = inlined_call_operand.vmem [shape: f32[3,64,112], index: 1, kind: input, shape index: {}]
  %s2 = inlined_call_operand.vmem [shape: f32[1,112], index: 2, kind: input, shape index: {}]
  %s3 = inlined_call_operand.vmem [shape: f32[3,112,96], index: 3, kind: input, shape index: {}]
  %s4 = inlined_call_operand.vmem [shape: f32[1,96], index: 4, kind: input, shape index: {}]
  %s5 = inlined_call_operand.vmem [shape: f32[3,96,64], index: 5, kind: input, shape index: {}]
  %s6 = inlined_call_operand.vmem [shape: f32[1,64], index: 6, kind: input, shape index: {}]
  %s7 = inlined_call_operand.vmem [shape: f32[64,512], index: 7, kind: input, shape index: {}]
  %s8 = inlined_call_operand.vmem [shape: f32[1,512], index: 8, kind: input, shape index: {}]
  %s9 = inlined_call_operand.vmem [shape: f32[512,128], index: 9, kind: input, shape index: {}]
  %s10 = inlined_call_operand.vmem [shape: f32[1,128], index: 10, kind: input, shape index: {}]
  %s11 = inlined_call_operand.vmem [shape: f32[8,128], index: 11, kind: output, shape index: {}]
  %s12 = sld [smem:[#allocation0]]
  $region54: #{dqn_forward.1} parent=0
    _
  %s14 = ssub.s32 1, %s12
  %s15 = scalar_select 0, %s14, %s12
  // Predicated region
  $region2: #{dqn_forward.1} parent=0 // pred_check
    _
  $region3: #{dqn_forward.1} parent=0 // pred_check_branch
    %17 = sbr.rel (0) target = $region5
  $region4: #{dqn_forward.1} parent=0 // pred_region
    _
  $region5: #{dqn_forward.1} parent=0 // pred_fallthru
    _
  // Predicated region
  $region6: #{dqn_forward.1} parent=0 // pred_check
    _
  $region7: #{dqn_forward.1} parent=0 // pred_check_branch
    %19 = sbr.rel (0) target = $region9
  $region8: #{dqn_forward.1} parent=0 // pred_region
    _
  $region9: #{dqn_forward.1} parent=0 // pred_fallthru
    _
  // Predicated region
  $region10: #{dqn_forward.1} parent=0 // pred_check
    _
  $region11: #{dqn_forward.1} parent=0 // pred_check_branch
    %21 = sbr.rel (0) target = $region13
  $region12: #{dqn_forward.1} parent=0 // pred_region
    _
  $region13: #{dqn_forward.1} parent=0 // pred_fallthru
    _
  // Predicated region
  $region14: #{dqn_forward.1} parent=0 // pred_check
    _
  $region15: #{dqn_forward.1} parent=0 // pred_check_branch
    %23 = sbr.rel (0) target = $region17
  $region16: #{dqn_forward.1} parent=0 // pred_region
    _
  $region17: #{dqn_forward.1} parent=0 // pred_fallthru
    _
  // Predicated region
  $region18: #{dqn_forward.1} parent=0 // pred_check
    _
  $region19: #{dqn_forward.1} parent=0 // pred_check_branch
    %25 = sbr.rel (0) target = $region21
  $region20: #{dqn_forward.1} parent=0 // pred_region
    _
  $region21: #{dqn_forward.1} parent=0 // pred_fallthru
    _
  // Predicated region
  $region22: #{dqn_forward.1} parent=0 // pred_check
    _
  $region23: #{dqn_forward.1} parent=0 // pred_check_branch
    %27 = sbr.rel (0) target = $region25
  $region24: #{dqn_forward.1} parent=0 // pred_region
    _
  $region25: #{dqn_forward.1} parent=0 // pred_fallthru
    _
  // Predicated region
  $region26: #{dqn_forward.1} parent=0 // pred_check
    _
  $region27: #{dqn_forward.1} parent=0 // pred_check_branch
    %29 = sbr.rel (0) target = $region29
  $region28: #{dqn_forward.1} parent=0 // pred_region
    _
  $region29: #{dqn_forward.1} parent=0 // pred_fallthru
    _
  // Predicated region
  $region30: #{dqn_forward.1} parent=0 // pred_check
    _
  $region31: #{dqn_forward.1} parent=0 // pred_check_branch
    %31 = sbr.rel (0) target = $region33
  $region32: #{dqn_forward.1} parent=0 // pred_region
    _
  $region33: #{dqn_forward.1} parent=0 // pred_fallthru
    _
  // Predicated region
  $region34: #{dqn_forward.1} parent=0 // pred_check
    _
  $region35: #{dqn_forward.1} parent=0 // pred_check_branch
    %33 = sbr.rel (0) target = $region37
  $region36: #{dqn_forward.1} parent=0 // pred_region
    _
  $region37: #{dqn_forward.1} parent=0 // pred_fallthru
    _
  // Predicated region
  $region38: #{dqn_forward.1} parent=0 // pred_check
    _
  $region39: #{dqn_forward.1} parent=0 // pred_check_branch
    %35 = sbr.rel (0) target = $region41
  $region40: #{dqn_forward.1} parent=0 // pred_region
    _
  $region41: #{dqn_forward.1} parent=0 // pred_fallthru
    _
  // Predicated region
  $region42: #{dqn_forward.1} parent=0 // pred_check
    _
  $region43: #{dqn_forward.1} parent=0 // pred_check_branch
    %37 = sbr.rel (0) target = $region45
  $region44: #{dqn_forward.1} parent=0 // pred_region
    _
  $region45: #{dqn_forward.1} parent=0 // pred_fallthru
    _
  %v38 = vld [vmem:[%s2] sm:$0x1]
  %v39 = vld [vmem:[%s0] sm:$0xff]
  %v40 = vld [vmem:[%s1] sm:$0xff]
  %v41 = vld [vmem:[%s1 + $0x8] sm:$0xff]
  %v42 = vld [vmem:[%s1 + $0x10] sm:$0xff]
  %v43 = vld [vmem:[%s1 + $0x18] sm:$0xff]
  %v44 = vld [vmem:[%s1 + $0x20] sm:$0xff]
  %v45 = vld [vmem:[%s1 + $0x28] sm:$0xff]
  %v46 = vld [vmem:[%s1 + $0x30] sm:$0xff]
  %v47 = vld [vmem:[%s1 + $0x38] sm:$0xff]
  %vm48 = vcmask 523264
  %v50 = vsel %vm48, %v39, 0
  %52 = vmatpush.msra.mxu0 0.0
  %53 = vmatpush.msra.mxu0 0.0
  %54 = vmatpush.msra.mxu0 0.0
  %55 = vmatpush.msra.mxu0 0.0
  %56 = vmatpush.msra.mxu0 0.0
  %57 = vmatpush.msra.mxu0 0.0
  %58 = vmatpush.msra.mxu0 0.0
  %59 = vmatpush.msra.mxu0 0.0
  %60 = vmatpush.msra.mxu0 %v47
  %61 = vmatpush.msra.mxu0 %v46
  %62 = vmatpush.msra.mxu0 %v45
  %63 = vmatpush.msra.mxu0 %v44
  %64 = vmatpush.msra.mxu0 %v43
  %65 = vmatpush.msra.mxu0 %v42
  %66 = vmatpush.msra.mxu0 %v41
  %67 = vmatpush.msra.mxu0 %v40
  %68 = vmatmul.f32.gmra.mxu0 %v50
  %v69 = vpop.f32.mrf.mxu0
  %v70 = vadd.f32 0.0, %v69
  %71 = vdwg.mxu0
  %v73 = vperm.slane %v38, 0
  %v75 = vadd.f32 %v73, %v70
  %s76 = scalar_lea.vmem %s0, 8
  %v77 = vld [vmem:[%s76] sm:$0xff]
  %s78 = scalar_lea.vmem %s1, 64
  %v79 = vld [vmem:[%s78] sm:$0xff]
  %v80 = vld [vmem:[%s78 + $0x8] sm:$0xff]
  %v81 = vld [vmem:[%s78 + $0x10] sm:$0xff]
  %v82 = vld [vmem:[%s78 + $0x18] sm:$0xff]
  %v83 = vld [vmem:[%s78 + $0x20] sm:$0xff]
  %v84 = vld [vmem:[%s78 + $0x28] sm:$0xff]
  %v85 = vld [vmem:[%s78 + $0x30] sm:$0xff]
  %v86 = vld [vmem:[%s78 + $0x38] sm:$0xff]
  %v88 = vsel %vm48, %v77, 0
  %90 = vmatpush.msra.mxu0 0.0
  %91 = vmatpush.msra.mxu0 0.0
  %92 = vmatpush.msra.mxu0 0.0
  %93 = vmatpush.msra.mxu0 0.0
  %94 = vmatpush.msra.mxu0 0.0
  %95 = vmatpush.msra.mxu0 0.0
  %96 = vmatpush.msra.mxu0 0.0
  %97 = vmatpush.msra.mxu0 0.0
  %98 = vmatpush.msra.mxu0 %v86
  %99 = vmatpush.msra.mxu0 %v85
  %100 = vmatpush.msra.mxu0 %v84
  %101 = vmatpush.msra.mxu0 %v83
  %102 = vmatpush.msra.mxu0 %v82
  %103 = vmatpush.msra.mxu0 %v81
  %104 = vmatpush.msra.mxu0 %v80
  %105 = vmatpush.msra.mxu0 %v79
  %106 = vmatmul.f32.gmra.mxu0 %v88
  %v107 = vpop.f32.mrf.mxu0
  %v108 = vadd.f32 0.0, %v107
  %109 = vdwg.mxu0
  %v110 = vadd.f32 %v75, %v108
  %s111 = scalar_lea.vmem %s0, 16
  %v112 = vld [vmem:[%s111] sm:$0xff]
  %s113 = scalar_lea.vmem %s1, 128
  %v114 = vld [vmem:[%s113] sm:$0xff]
  %v115 = vld [vmem:[%s113 + $0x8] sm:$0xff]
  %v116 = vld [vmem:[%s113 + $0x10] sm:$0xff]
  %v117 = vld [vmem:[%s113 + $0x18] sm:$0xff]
  %v118 = vld [vmem:[%s113 + $0x20] sm:$0xff]
  %v119 = vld [vmem:[%s113 + $0x28] sm:$0xff]
  %v120 = vld [vmem:[%s113 + $0x30] sm:$0xff]
  %v121 = vld [vmem:[%s113 + $0x38] sm:$0xff]
  %v123 = vsel %vm48, %v112, 0
  %125 = vmatpush.msra.mxu0 0.0
  %126 = vmatpush.msra.mxu0 0.0
  %127 = vmatpush.msra.mxu0 0.0
  %128 = vmatpush.msra.mxu0 0.0
  %129 = vmatpush.msra.mxu0 0.0
  %130 = vmatpush.msra.mxu0 0.0
  %131 = vmatpush.msra.mxu0 0.0
  %132 = vmatpush.msra.mxu0 0.0
  %133 = vmatpush.msra.mxu0 %v121
  %134 = vmatpush.msra.mxu0 %v120
  %135 = vmatpush.msra.mxu0 %v119
  %136 = vmatpush.msra.mxu0 %v118
  %137 = vmatpush.msra.mxu0 %v117
  %138 = vmatpush.msra.mxu0 %v116
  %139 = vmatpush.msra.mxu0 %v115
  %140 = vmatpush.msra.mxu0 %v114
  %141 = vmatmul.f32.gmra.mxu0 %v123
  %v142 = vpop.f32.mrf.mxu0
  %v143 = vadd.f32 0.0, %v142
  %144 = vdwg.mxu0
  %v145 = vadd.f32 %v110, %v143
  %v146 = vmax.f32 %v145, 0.0
  %147 = vmatpush.msra.mxu0 0.0
  %148 = vmatpush.msra.mxu0 0.0
  %149 = vmatpush.msra.mxu0 0.0
  %150 = vmatpush.msra.mxu0 0.0
  %151 = vmatpush.msra.mxu0 0.0
  %152 = vmatpush.msra.mxu0 0.0
  %153 = vmatpush.msra.mxu0 0.0
  %154 = vmatpush.msra.mxu0 0.0
  %155 = vmatpush.msra.mxu0 %v47
  %156 = vmatpush.msra.mxu0 %v46
  %157 = vmatpush.msra.mxu0 %v45
  %158 = vmatpush.msra.mxu0 %v44
  %159 = vmatpush.msra.mxu0 %v43
  %160 = vmatpush.msra.mxu0 %v42
  %161 = vmatpush.msra.mxu0 %v41
  %162 = vmatpush.msra.mxu0 %v40
  %163 = vmatmul.f32.gmra.mxu0 %v123
  %v164 = vpop.f32.mrf.mxu0
  %v165 = vadd.f32 0.0, %v164
  %166 = vdwg.mxu0
  %v167 = vadd.f32 %v73, %v165
  %s168 = scalar_lea.vmem %s0, 24
  %v169 = vld [vmem:[%s168] sm:$0xff]
  %v171 = vsel %vm48, %v169, 0
  %173 = vmatpush.msra.mxu0 0.0
  %174 = vmatpush.msra.mxu0 0.0
  %175 = vmatpush.msra.mxu0 0.0
  %176 = vmatpush.msra.mxu0 0.0
  %177 = vmatpush.msra.mxu0 0.0
  %178 = vmatpush.msra.mxu0 0.0
  %179 = vmatpush.msra.mxu0 0.0
  %180 = vmatpush.msra.mxu0 0.0
  %181 = vmatpush.msra.mxu0 %v86
  %182 = vmatpush.msra.mxu0 %v85
  %183 = vmatpush.msra.mxu0 %v84
  %184 = vmatpush.msra.mxu0 %v83
  %185 = vmatpush.msra.mxu0 %v82
  %186 = vmatpush.msra.mxu0 %v81
  %187 = vmatpush.msra.mxu0 %v80
  %188 = vmatpush.msra.mxu0 %v79
  %189 = vmatmul.f32.gmra.mxu0 %v171
  %v190 = vpop.f32.mrf.mxu0
  %v191 = vadd.f32 0.0, %v190
  %192 = vdwg.mxu0
  %v193 = vadd.f32 %v167, %v191
  %s194 = scalar_lea.vmem %s0, 32
  %v195 = vld [vmem:[%s194] sm:$0xff]
  %v197 = vsel %vm48, %v195, 0
  %199 = vmatpush.msra.mxu0 0.0
  %200 = vmatpush.msra.mxu0 0.0
  %201 = vmatpush.msra.mxu0 0.0
  %202 = vmatpush.msra.mxu0 0.0
  %203 = vmatpush.msra.mxu0 0.0
  %204 = vmatpush.msra.mxu0 0.0
  %205 = vmatpush.msra.mxu0 0.0
  %206 = vmatpush.msra.mxu0 0.0
  %207 = vmatpush.msra.mxu0 %v121
  %208 = vmatpush.msra.mxu0 %v120
  %209 = vmatpush.msra.mxu0 %v119
  %210 = vmatpush.msra.mxu0 %v118
  %211 = vmatpush.msra.mxu0 %v117
  %212 = vmatpush.msra.mxu0 %v116
  %213 = vmatpush.msra.mxu0 %v115
  %214 = vmatpush.msra.mxu0 %v114
  %215 = vmatmul.f32.gmra.mxu0 %v197
  %v216 = vpop.f32.mrf.mxu0
  %v217 = vadd.f32 0.0, %v216
  %218 = vdwg.mxu0
  %v219 = vadd.f32 %v193, %v217
  %v220 = vmax.f32 %v219, 0.0
  %221 = vmatpush.msra.mxu0 0.0
  %222 = vmatpush.msra.mxu0 0.0
  %223 = vmatpush.msra.mxu0 0.0
  %224 = vmatpush.msra.mxu0 0.0
  %225 = vmatpush.msra.mxu0 0.0
  %226 = vmatpush.msra.mxu0 0.0
  %227 = vmatpush.msra.mxu0 0.0
  %228 = vmatpush.msra.mxu0 0.0
  %229 = vmatpush.msra.mxu0 %v47
  %230 = vmatpush.msra.mxu0 %v46
  %231 = vmatpush.msra.mxu0 %v45
  %232 = vmatpush.msra.mxu0 %v44
  %233 = vmatpush.msra.mxu0 %v43
  %234 = vmatpush.msra.mxu0 %v42
  %235 = vmatpush.msra.mxu0 %v41
  %236 = vmatpush.msra.mxu0 %v40
  %237 = vmatmul.f32.gmra.mxu0 %v197
  %v238 = vpop.f32.mrf.mxu0
  %v239 = vadd.f32 0.0, %v238
  %240 = vdwg.mxu0
  %v241 = vadd.f32 %v73, %v239
  %s242 = scalar_lea.vmem %s0, 40
  %v243 = vld [vmem:[%s242] sm:$0xff]
  %v245 = vsel %vm48, %v243, 0
  %247 = vmatpush.msra.mxu0 0.0
  %248 = vmatpush.msra.mxu0 0.0
  %249 = vmatpush.msra.mxu0 0.0
  %250 = vmatpush.msra.mxu0 0.0
  %251 = vmatpush.msra.mxu0 0.0
  %252 = vmatpush.msra.mxu0 0.0
  %253 = vmatpush.msra.mxu0 0.0
  %254 = vmatpush.msra.mxu0 0.0
  %255 = vmatpush.msra.mxu0 %v86
  %256 = vmatpush.msra.mxu0 %v85
  %257 = vmatpush.msra.mxu0 %v84
  %258 = vmatpush.msra.mxu0 %v83
  %259 = vmatpush.msra.mxu0 %v82
  %260 = vmatpush.msra.mxu0 %v81
  %261 = vmatpush.msra.mxu0 %v80
  %262 = vmatpush.msra.mxu0 %v79
  %263 = vmatmul.f32.gmra.mxu0 %v245
  %v264 = vpop.f32.mrf.mxu0
  %v265 = vadd.f32 0.0, %v264
  %266 = vdwg.mxu0
  %v267 = vadd.f32 %v241, %v265
  %s268 = scalar_lea.vmem %s0, 48
  %v269 = vld [vmem:[%s268] sm:$0xff]
  %v271 = vsel %vm48, %v269, 0
  %273 = vmatpush.msra.mxu0 0.0
  %274 = vmatpush.msra.mxu0 0.0
  %275 = vmatpush.msra.mxu0 0.0
  %276 = vmatpush.msra.mxu0 0.0
  %277 = vmatpush.msra.mxu0 0.0
  %278 = vmatpush.msra.mxu0 0.0
  %279 = vmatpush.msra.mxu0 0.0
  %280 = vmatpush.msra.mxu0 0.0
  %281 = vmatpush.msra.mxu0 %v121
  %282 = vmatpush.msra.mxu0 %v120
  %283 = vmatpush.msra.mxu0 %v119
  %284 = vmatpush.msra.mxu0 %v118
  %285 = vmatpush.msra.mxu0 %v117
  %286 = vmatpush.msra.mxu0 %v116
  %287 = vmatpush.msra.mxu0 %v115
  %288 = vmatpush.msra.mxu0 %v114
  %289 = vmatmul.f32.gmra.mxu0 %v271
  %v290 = vpop.f32.mrf.mxu0
  %v291 = vadd.f32 0.0, %v290
  %292 = vdwg.mxu0
  %v293 = vadd.f32 %v267, %v291
  %v294 = vmax.f32 %v293, 0.0
  %295 = vmatpush.msra.mxu0 0.0
  %296 = vmatpush.msra.mxu0 0.0
  %297 = vmatpush.msra.mxu0 0.0
  %298 = vmatpush.msra.mxu0 0.0
  %299 = vmatpush.msra.mxu0 0.0
  %300 = vmatpush.msra.mxu0 0.0
  %301 = vmatpush.msra.mxu0 0.0
  %302 = vmatpush.msra.mxu0 0.0
  %303 = vmatpush.msra.mxu0 %v47
  %304 = vmatpush.msra.mxu0 %v46
  %305 = vmatpush.msra.mxu0 %v45
  %306 = vmatpush.msra.mxu0 %v44
  %307 = vmatpush.msra.mxu0 %v43
  %308 = vmatpush.msra.mxu0 %v42
  %309 = vmatpush.msra.mxu0 %v41
  %310 = vmatpush.msra.mxu0 %v40
  %311 = vmatmul.f32.gmra.mxu0 %v271
  %v312 = vpop.f32.mrf.mxu0
  %v313 = vadd.f32 0.0, %v312
  %314 = vdwg.mxu0
  %v315 = vadd.f32 %v73, %v313
  %s316 = scalar_lea.vmem %s0, 56
  %v317 = vld [vmem:[%s316] sm:$0xff]
  %v319 = vsel %vm48, %v317, 0
  %321 = vmatpush.msra.mxu0 0.0
  %322 = vmatpush.msra.mxu0 0.0
  %323 = vmatpush.msra.mxu0 0.0
  %324 = vmatpush.msra.mxu0 0.0
  %325 = vmatpush.msra.mxu0 0.0
  %326 = vmatpush.msra.mxu0 0.0
  %327 = vmatpush.msra.mxu0 0.0
  %328 = vmatpush.msra.mxu0 0.0
  %329 = vmatpush.msra.mxu0 %v86
  %330 = vmatpush.msra.mxu0 %v85
  %331 = vmatpush.msra.mxu0 %v84
  %332 = vmatpush.msra.mxu0 %v83
  %333 = vmatpush.msra.mxu0 %v82
  %334 = vmatpush.msra.mxu0 %v81
  %335 = vmatpush.msra.mxu0 %v80
  %336 = vmatpush.msra.mxu0 %v79
  %337 = vmatmul.f32.gmra.mxu0 %v319
  %v338 = vpop.f32.mrf.mxu0
  %v339 = vadd.f32 0.0, %v338
  %340 = vdwg.mxu0
  %v341 = vadd.f32 %v315, %v339
  %s342 = scalar_lea.vmem %s0, 64
  %v343 = vld [vmem:[%s342] sm:$0xff]
  %v345 = vsel %vm48, %v343, 0
  %347 = vmatpush.msra.mxu0 0.0
  %348 = vmatpush.msra.mxu0 0.0
  %349 = vmatpush.msra.mxu0 0.0
  %350 = vmatpush.msra.mxu0 0.0
  %351 = vmatpush.msra.mxu0 0.0
  %352 = vmatpush.msra.mxu0 0.0
  %353 = vmatpush.msra.mxu0 0.0
  %354 = vmatpush.msra.mxu0 0.0
  %355 = vmatpush.msra.mxu0 %v121
  %356 = vmatpush.msra.mxu0 %v120
  %357 = vmatpush.msra.mxu0 %v119
  %358 = vmatpush.msra.mxu0 %v118
  %359 = vmatpush.msra.mxu0 %v117
  %360 = vmatpush.msra.mxu0 %v116
  %361 = vmatpush.msra.mxu0 %v115
  %362 = vmatpush.msra.mxu0 %v114
  %363 = vmatmul.f32.gmra.mxu0 %v345
  %v364 = vpop.f32.mrf.mxu0
  %v365 = vadd.f32 0.0, %v364
  %366 = vdwg.mxu0
  %v367 = vadd.f32 %v341, %v365
  %v368 = vmax.f32 %v367, 0.0
  %369 = vmatpush.msra.mxu0 0.0
  %370 = vmatpush.msra.mxu0 0.0
  %371 = vmatpush.msra.mxu0 0.0
  %372 = vmatpush.msra.mxu0 0.0
  %373 = vmatpush.msra.mxu0 0.0
  %374 = vmatpush.msra.mxu0 0.0
  %375 = vmatpush.msra.mxu0 0.0
  %376 = vmatpush.msra.mxu0 0.0
  %377 = vmatpush.msra.mxu0 %v47
  %378 = vmatpush.msra.mxu0 %v46
  %379 = vmatpush.msra.mxu0 %v45
  %380 = vmatpush.msra.mxu0 %v44
  %381 = vmatpush.msra.mxu0 %v43
  %382 = vmatpush.msra.mxu0 %v42
  %383 = vmatpush.msra.mxu0 %v41
  %384 = vmatpush.msra.mxu0 %v40
  %385 = vmatmul.f32.gmra.mxu0 %v345
  %v386 = vpop.f32.mrf.mxu0
  %v387 = vadd.f32 0.0, %v386
  %388 = vdwg.mxu0
  %v389 = vadd.f32 %v73, %v387
  %s390 = scalar_lea.vmem %s0, 72
  %v391 = vld [vmem:[%s390] sm:$0xff]
  %v393 = vsel %vm48, %v391, 0
  %395 = vmatpush.msra.mxu0 0.0
  %396 = vmatpush.msra.mxu0 0.0
  %397 = vmatpush.msra.mxu0 0.0
  %398 = vmatpush.msra.mxu0 0.0
  %399 = vmatpush.msra.mxu0 0.0
  %400 = vmatpush.msra.mxu0 0.0
  %401 = vmatpush.msra.mxu0 0.0
  %402 = vmatpush.msra.mxu0 0.0
  %403 = vmatpush.msra.mxu0 %v86
  %404 = vmatpush.msra.mxu0 %v85
  %405 = vmatpush.msra.mxu0 %v84
  %406 = vmatpush.msra.mxu0 %v83
  %407 = vmatpush.msra.mxu0 %v82
  %408 = vmatpush.msra.mxu0 %v81
  %409 = vmatpush.msra.mxu0 %v80
  %410 = vmatpush.msra.mxu0 %v79
  %411 = vmatmul.f32.gmra.mxu0 %v393
  %v412 = vpop.f32.mrf.mxu0
  %v413 = vadd.f32 0.0, %v412
  %414 = vdwg.mxu0
  %v415 = vadd.f32 %v389, %v413
  %s416 = scalar_lea.vmem %s0, 80
  %v417 = vld [vmem:[%s416] sm:$0xff]
  %v419 = vsel %vm48, %v417, 0
  %421 = vmatpush.msra.mxu0 0.0
  %422 = vmatpush.msra.mxu0 0.0
  %423 = vmatpush.msra.mxu0 0.0
  %424 = vmatpush.msra.mxu0 0.0
  %425 = vmatpush.msra.mxu0 0.0
  %426 = vmatpush.msra.mxu0 0.0
  %427 = vmatpush.msra.mxu0 0.0
  %428 = vmatpush.msra.mxu0 0.0
  %429 = vmatpush.msra.mxu0 %v121
  %430 = vmatpush.msra.mxu0 %v120
  %431 = vmatpush.msra.mxu0 %v119
  %432 = vmatpush.msra.mxu0 %v118
  %433 = vmatpush.msra.mxu0 %v117
  %434 = vmatpush.msra.mxu0 %v116
  %435 = vmatpush.msra.mxu0 %v115
  %436 = vmatpush.msra.mxu0 %v114
  %437 = vmatmul.f32.gmra.mxu0 %v419
  %v438 = vpop.f32.mrf.mxu0
  %v439 = vadd.f32 0.0, %v438
  %440 = vdwg.mxu0
  %v441 = vadd.f32 %v415, %v439
  %v442 = vmax.f32 %v441, 0.0
  %443 = vmatpush.msra.mxu0 0.0
  %444 = vmatpush.msra.mxu0 0.0
  %445 = vmatpush.msra.mxu0 0.0
  %446 = vmatpush.msra.mxu0 0.0
  %447 = vmatpush.msra.mxu0 0.0
  %448 = vmatpush.msra.mxu0 0.0
  %449 = vmatpush.msra.mxu0 0.0
  %450 = vmatpush.msra.mxu0 0.0
  %451 = vmatpush.msra.mxu0 %v47
  %452 = vmatpush.msra.mxu0 %v46
  %453 = vmatpush.msra.mxu0 %v45
  %454 = vmatpush.msra.mxu0 %v44
  %455 = vmatpush.msra.mxu0 %v43
  %456 = vmatpush.msra.mxu0 %v42
  %457 = vmatpush.msra.mxu0 %v41
  %458 = vmatpush.msra.mxu0 %v40
  %459 = vmatmul.f32.gmra.mxu0 %v419
  %v460 = vpop.f32.mrf.mxu0
  %v461 = vadd.f32 0.0, %v460
  %462 = vdwg.mxu0
  %v463 = vadd.f32 %v73, %v461
  %s464 = scalar_lea.vmem %s0, 88
  %v465 = vld [vmem:[%s464] sm:$0xff]
  %v467 = vsel %vm48, %v465, 0
  %469 = vmatpush.msra.mxu0 0.0
  %470 = vmatpush.msra.mxu0 0.0
  %471 = vmatpush.msra.mxu0 0.0
  %472 = vmatpush.msra.mxu0 0.0
  %473 = vmatpush.msra.mxu0 0.0
  %474 = vmatpush.msra.mxu0 0.0
  %475 = vmatpush.msra.mxu0 0.0
  %476 = vmatpush.msra.mxu0 0.0
  %477 = vmatpush.msra.mxu0 %v86
  %478 = vmatpush.msra.mxu0 %v85
  %479 = vmatpush.msra.mxu0 %v84
  %480 = vmatpush.msra.mxu0 %v83
  %481 = vmatpush.msra.mxu0 %v82
  %482 = vmatpush.msra.mxu0 %v81
  %483 = vmatpush.msra.mxu0 %v80
  %484 = vmatpush.msra.mxu0 %v79
  %485 = vmatmul.f32.gmra.mxu0 %v467
  %v486 = vpop.f32.mrf.mxu0
  %v487 = vadd.f32 0.0, %v486
  %488 = vdwg.mxu0
  %v489 = vadd.f32 %v463, %v487
  %s490 = scalar_lea.vmem %s0, 96
  %v491 = vld [vmem:[%s490] sm:$0xff]
  %v493 = vsel %vm48, %v491, 0
  %495 = vmatpush.msra.mxu0 0.0
  %496 = vmatpush.msra.mxu0 0.0
  %497 = vmatpush.msra.mxu0 0.0
  %498 = vmatpush.msra.mxu0 0.0
  %499 = vmatpush.msra.mxu0 0.0
  %500 = vmatpush.msra.mxu0 0.0
  %501 = vmatpush.msra.mxu0 0.0
  %502 = vmatpush.msra.mxu0 0.0
  %503 = vmatpush.msra.mxu0 %v121
  %504 = vmatpush.msra.mxu0 %v120
  %505 = vmatpush.msra.mxu0 %v119
  %506 = vmatpush.msra.mxu0 %v118
  %507 = vmatpush.msra.mxu0 %v117
  %508 = vmatpush.msra.mxu0 %v116
  %509 = vmatpush.msra.mxu0 %v115
  %510 = vmatpush.msra.mxu0 %v114
  %511 = vmatmul.f32.gmra.mxu0 %v493
  %v512 = vpop.f32.mrf.mxu0
  %v513 = vadd.f32 0.0, %v512
  %514 = vdwg.mxu0
  %v515 = vadd.f32 %v489, %v513
  %v516 = vmax.f32 %v515, 0.0
  %517 = vmatpush.msra.mxu0 0.0
  %518 = vmatpush.msra.mxu0 0.0
  %519 = vmatpush.msra.mxu0 0.0
  %520 = vmatpush.msra.mxu0 0.0
  %521 = vmatpush.msra.mxu0 0.0
  %522 = vmatpush.msra.mxu0 0.0
  %523 = vmatpush.msra.mxu0 0.0
  %524 = vmatpush.msra.mxu0 0.0
  %525 = vmatpush.msra.mxu0 %v47
  %526 = vmatpush.msra.mxu0 %v46
  %527 = vmatpush.msra.mxu0 %v45
  %528 = vmatpush.msra.mxu0 %v44
  %529 = vmatpush.msra.mxu0 %v43
  %530 = vmatpush.msra.mxu0 %v42
  %531 = vmatpush.msra.mxu0 %v41
  %532 = vmatpush.msra.mxu0 %v40
  %533 = vmatmul.f32.gmra.mxu0 %v493
  %v534 = vpop.f32.mrf.mxu0
  %v535 = vadd.f32 0.0, %v534
  %536 = vdwg.mxu0
  %v537 = vadd.f32 %v73, %v535
  %s538 = scalar_lea.vmem %s0, 104
  %v539 = vld [vmem:[%s538] sm:$0xff]
  %v541 = vsel %vm48, %v539, 0
  %543 = vmatpush.msra.mxu0 0.0
  %544 = vmatpush.msra.mxu0 0.0
  %545 = vmatpush.msra.mxu0 0.0
  %546 = vmatpush.msra.mxu0 0.0
  %547 = vmatpush.msra.mxu0 0.0
  %548 = vmatpush.msra.mxu0 0.0
  %549 = vmatpush.msra.mxu0 0.0
  %550 = vmatpush.msra.mxu0 0.0
  %551 = vmatpush.msra.mxu0 %v86
  %552 = vmatpush.msra.mxu0 %v85
  %553 = vmatpush.msra.mxu0 %v84
  %554 = vmatpush.msra.mxu0 %v83
  %555 = vmatpush.msra.mxu0 %v82
  %556 = vmatpush.msra.mxu0 %v81
  %557 = vmatpush.msra.mxu0 %v80
  %558 = vmatpush.msra.mxu0 %v79
  %559 = vmatmul.f32.gmra.mxu0 %v541
  %v560 = vpop.f32.mrf.mxu0
  %v561 = vadd.f32 0.0, %v560
  %562 = vdwg.mxu0
  %v563 = vadd.f32 %v537, %v561
  %s564 = scalar_lea.vmem %s0, 112
  %v565 = vld [vmem:[%s564] sm:$0xff]
  %v567 = vsel %vm48, %v565, 0
  %569 = vmatpush.msra.mxu0 0.0
  %570 = vmatpush.msra.mxu0 0.0
  %571 = vmatpush.msra.mxu0 0.0
  %572 = vmatpush.msra.mxu0 0.0
  %573 = vmatpush.msra.mxu0 0.0
  %574 = vmatpush.msra.mxu0 0.0
  %575 = vmatpush.msra.mxu0 0.0
  %576 = vmatpush.msra.mxu0 0.0
  %577 = vmatpush.msra.mxu0 %v121
  %578 = vmatpush.msra.mxu0 %v120
  %579 = vmatpush.msra.mxu0 %v119
  %580 = vmatpush.msra.mxu0 %v118
  %581 = vmatpush.msra.mxu0 %v117
  %582 = vmatpush.msra.mxu0 %v116
  %583 = vmatpush.msra.mxu0 %v115
  %584 = vmatpush.msra.mxu0 %v114
  %585 = vmatmul.f32.gmra.mxu0 %v567
  %v586 = vpop.f32.mrf.mxu0
  %v587 = vadd.f32 0.0, %v586
  %588 = vdwg.mxu0
  %v589 = vadd.f32 %v563, %v587
  %v590 = vmax.f32 %v589, 0.0
  %v591 = vld [vmem:[%s4] sm:$0x1]
  %v592 = vld [vmem:[%s3] sm:$0xff]
  %v593 = vld [vmem:[%s3 + $0x8] sm:$0xff]
  %v594 = vld [vmem:[%s3 + $0x10] sm:$0xff]
  %v595 = vld [vmem:[%s3 + $0x18] sm:$0xff]
  %v596 = vld [vmem:[%s3 + $0x20] sm:$0xff]
  %v597 = vld [vmem:[%s3 + $0x28] sm:$0xff]
  %v598 = vld [vmem:[%s3 + $0x30] sm:$0xff]
  %v599 = vld [vmem:[%s3 + $0x38] sm:$0xff]
  %v600 = vld [vmem:[%s3 + $0x40] sm:$0xff]
  %v601 = vld [vmem:[%s3 + $0x48] sm:$0xff]
  %v602 = vld [vmem:[%s3 + $0x50] sm:$0xff]
  %v603 = vld [vmem:[%s3 + $0x58] sm:$0xff]
  %v604 = vld [vmem:[%s3 + $0x60] sm:$0xff]
  %v605 = vld [vmem:[%s3 + $0x68] sm:$0xff]
  %vm606 = vcmask 916480
  %v608 = vsel %vm606, %v146, 0
  %610 = vmatpush.msra.mxu0 0.0
  %611 = vmatpush.msra.mxu0 0.0
  %612 = vmatpush.msra.mxu0 %v605
  %613 = vmatpush.msra.mxu0 %v604
  %614 = vmatpush.msra.mxu0 %v603
  %615 = vmatpush.msra.mxu0 %v602
  %616 = vmatpush.msra.mxu0 %v601
  %617 = vmatpush.msra.mxu0 %v600
  %618 = vmatpush.msra.mxu0 %v599
  %619 = vmatpush.msra.mxu0 %v598
  %620 = vmatpush.msra.mxu0 %v597
  %621 = vmatpush.msra.mxu0 %v596
  %622 = vmatpush.msra.mxu0 %v595
  %623 = vmatpush.msra.mxu0 %v594
  %624 = vmatpush.msra.mxu0 %v593
  %625 = vmatpush.msra.mxu0 %v592
  %626 = vmatmul.f32.gmra.mxu0 %v608
  %v627 = vpop.f32.mrf.mxu0
  %v628 = vadd.f32 0.0, %v627
  %629 = vdwg.mxu0
  %v631 = vperm.slane %v591, 0
  %v633 = vadd.f32 %v631, %v628
  %s634 = scalar_lea.vmem %s3, 112
  %v635 = vld [vmem:[%s634] sm:$0xff]
  %v636 = vld [vmem:[%s634 + $0x8] sm:$0xff]
  %v637 = vld [vmem:[%s634 + $0x10] sm:$0xff]
  %v638 = vld [vmem:[%s634 + $0x18] sm:$0xff]
  %v639 = vld [vmem:[%s634 + $0x20] sm:$0xff]
  %v640 = vld [vmem:[%s634 + $0x28] sm:$0xff]
  %v641 = vld [vmem:[%s634 + $0x30] sm:$0xff]
  %v642 = vld [vmem:[%s634 + $0x38] sm:$0xff]
  %v643 = vld [vmem:[%s634 + $0x40] sm:$0xff]
  %v644 = vld [vmem:[%s634 + $0x48] sm:$0xff]
  %v645 = vld [vmem:[%s634 + $0x50] sm:$0xff]
  %v646 = vld [vmem:[%s634 + $0x58] sm:$0xff]
  %v647 = vld [vmem:[%s634 + $0x60] sm:$0xff]
  %v648 = vld [vmem:[%s634 + $0x68] sm:$0xff]
  %v650 = vsel %vm606, %v220, 0
  %652 = vmatpush.msra.mxu0 0.0
  %653 = vmatpush.msra.mxu0 0.0
  %654 = vmatpush.msra.mxu0 %v648
  %655 = vmatpush.msra.mxu0 %v647
  %656 = vmatpush.msra.mxu0 %v646
  %657 = vmatpush.msra.mxu0 %v645
  %658 = vmatpush.msra.mxu0 %v644
  %659 = vmatpush.msra.mxu0 %v643
  %660 = vmatpush.msra.mxu0 %v642
  %661 = vmatpush.msra.mxu0 %v641
  %662 = vmatpush.msra.mxu0 %v640
  %663 = vmatpush.msra.mxu0 %v639
  %664 = vmatpush.msra.mxu0 %v638
  %665 = vmatpush.msra.mxu0 %v637
  %666 = vmatpush.msra.mxu0 %v636
  %667 = vmatpush.msra.mxu0 %v635
  %668 = vmatmul.f32.gmra.mxu0 %v650
  %v669 = vpop.f32.mrf.mxu0
  %v670 = vadd.f32 0.0, %v669
  %671 = vdwg.mxu0
  %v672 = vadd.f32 %v633, %v670
  %s673 = scalar_lea.vmem %s3, 224
  %v674 = vld [vmem:[%s673] sm:$0xff]
  %v675 = vld [vmem:[%s673 + $0x8] sm:$0xff]
  %v676 = vld [vmem:[%s673 + $0x10] sm:$0xff]
  %v677 = vld [vmem:[%s673 + $0x18] sm:$0xff]
  %v678 = vld [vmem:[%s673 + $0x20] sm:$0xff]
  %v679 = vld [vmem:[%s673 + $0x28] sm:$0xff]
  %v680 = vld [vmem:[%s673 + $0x30] sm:$0xff]
  %v681 = vld [vmem:[%s673 + $0x38] sm:$0xff]
  %v682 = vld [vmem:[%s673 + $0x40] sm:$0xff]
  %v683 = vld [vmem:[%s673 + $0x48] sm:$0xff]
  %v684 = vld [vmem:[%s673 + $0x50] sm:$0xff]
  %v685 = vld [vmem:[%s673 + $0x58] sm:$0xff]
  %v686 = vld [vmem:[%s673 + $0x60] sm:$0xff]
  %v687 = vld [vmem:[%s673 + $0x68] sm:$0xff]
  %v689 = vsel %vm606, %v294, 0
  %691 = vmatpush.msra.mxu0 0.0
  %692 = vmatpush.msra.mxu0 0.0
  %693 = vmatpush.msra.mxu0 %v687
  %694 = vmatpush.msra.mxu0 %v686
  %695 = vmatpush.msra.mxu0 %v685
  %696 = vmatpush.msra.mxu0 %v684
  %697 = vmatpush.msra.mxu0 %v683
  %698 = vmatpush.msra.mxu0 %v682
  %699 = vmatpush.msra.mxu0 %v681
  %700 = vmatpush.msra.mxu0 %v680
  %701 = vmatpush.msra.mxu0 %v679
  %702 = vmatpush.msra.mxu0 %v678
  %703 = vmatpush.msra.mxu0 %v677
  %704 = vmatpush.msra.mxu0 %v676
  %705 = vmatpush.msra.mxu0 %v675
  %706 = vmatpush.msra.mxu0 %v674
  %707 = vmatmul.f32.gmra.mxu0 %v689
  %v708 = vpop.f32.mrf.mxu0
  %v709 = vadd.f32 0.0, %v708
  %710 = vdwg.mxu0
  %v711 = vadd.f32 %v672, %v709
  %v712 = vmax.f32 %v711, 0.0
  %713 = vmatpush.msra.mxu0 0.0
  %714 = vmatpush.msra.mxu0 0.0
  %715 = vmatpush.msra.mxu0 %v605
  %716 = vmatpush.msra.mxu0 %v604
  %717 = vmatpush.msra.mxu0 %v603
  %718 = vmatpush.msra.mxu0 %v602
  %719 = vmatpush.msra.mxu0 %v601
  %720 = vmatpush.msra.mxu0 %v600
  %721 = vmatpush.msra.mxu0 %v599
  %722 = vmatpush.msra.mxu0 %v598
  %723 = vmatpush.msra.mxu0 %v597
  %724 = vmatpush.msra.mxu0 %v596
  %725 = vmatpush.msra.mxu0 %v595
  %726 = vmatpush.msra.mxu0 %v594
  %727 = vmatpush.msra.mxu0 %v593
  %728 = vmatpush.msra.mxu0 %v592
  %729 = vmatmul.f32.gmra.mxu0 %v689
  %v730 = vpop.f32.mrf.mxu0
  %v731 = vadd.f32 0.0, %v730
  %732 = vdwg.mxu0
  %v733 = vadd.f32 %v631, %v731
  %v735 = vsel %vm606, %v368, 0
  %737 = vmatpush.msra.mxu0 0.0
  %738 = vmatpush.msra.mxu0 0.0
  %739 = vmatpush.msra.mxu0 %v648
  %740 = vmatpush.msra.mxu0 %v647
  %741 = vmatpush.msra.mxu0 %v646
  %742 = vmatpush.msra.mxu0 %v645
  %743 = vmatpush.msra.mxu0 %v644
  %744 = vmatpush.msra.mxu0 %v643
  %745 = vmatpush.msra.mxu0 %v642
  %746 = vmatpush.msra.mxu0 %v641
  %747 = vmatpush.msra.mxu0 %v640
  %748 = vmatpush.msra.mxu0 %v639
  %749 = vmatpush.msra.mxu0 %v638
  %750 = vmatpush.msra.mxu0 %v637
  %751 = vmatpush.msra.mxu0 %v636
  %752 = vmatpush.msra.mxu0 %v635
  %753 = vmatmul.f32.gmra.mxu0 %v735
  %v754 = vpop.f32.mrf.mxu0
  %v755 = vadd.f32 0.0, %v754
  %756 = vdwg.mxu0
  %v757 = vadd.f32 %v733, %v755
  %v759 = vsel %vm606, %v442, 0
  %761 = vmatpush.msra.mxu0 0.0
  %762 = vmatpush.msra.mxu0 0.0
  %763 = vmatpush.msra.mxu0 %v687
  %764 = vmatpush.msra.mxu0 %v686
  %765 = vmatpush.msra.mxu0 %v685
  %766 = vmatpush.msra.mxu0 %v684
  %767 = vmatpush.msra.mxu0 %v683
  %768 = vmatpush.msra.mxu0 %v682
  %769 = vmatpush.msra.mxu0 %v681
  %770 = vmatpush.msra.mxu0 %v680
  %771 = vmatpush.msra.mxu0 %v679
  %772 = vmatpush.msra.mxu0 %v678
  %773 = vmatpush.msra.mxu0 %v677
  %774 = vmatpush.msra.mxu0 %v676
  %775 = vmatpush.msra.mxu0 %v675
  %776 = vmatpush.msra.mxu0 %v674
  %777 = vmatmul.f32.gmra.mxu0 %v759
  %v778 = vpop.f32.mrf.mxu0
  %v779 = vadd.f32 0.0, %v778
  %780 = vdwg.mxu0
  %v781 = vadd.f32 %v757, %v779
  %v782 = vmax.f32 %v781, 0.0
  %783 = vmatpush.msra.mxu0 0.0
  %784 = vmatpush.msra.mxu0 0.0
  %785 = vmatpush.msra.mxu0 %v605
  %786 = vmatpush.msra.mxu0 %v604
  %787 = vmatpush.msra.mxu0 %v603
  %788 = vmatpush.msra.mxu0 %v602
  %789 = vmatpush.msra.mxu0 %v601
  %790 = vmatpush.msra.mxu0 %v600
  %791 = vmatpush.msra.mxu0 %v599
  %792 = vmatpush.msra.mxu0 %v598
  %793 = vmatpush.msra.mxu0 %v597
  %794 = vmatpush.msra.mxu0 %v596
  %795 = vmatpush.msra.mxu0 %v595
  %796 = vmatpush.msra.mxu0 %v594
  %797 = vmatpush.msra.mxu0 %v593
  %798 = vmatpush.msra.mxu0 %v592
  %799 = vmatmul.f32.gmra.mxu0 %v759
  %v800 = vpop.f32.mrf.mxu0
  %v801 = vadd.f32 0.0, %v800
  %802 = vdwg.mxu0
  %v803 = vadd.f32 %v631, %v801
  %v805 = vsel %vm606, %v516, 0
  %807 = vmatpush.msra.mxu0 0.0
  %808 = vmatpush.msra.mxu0 0.0
  %809 = vmatpush.msra.mxu0 %v648
  %810 = vmatpush.msra.mxu0 %v647
  %811 = vmatpush.msra.mxu0 %v646
  %812 = vmatpush.msra.mxu0 %v645
  %813 = vmatpush.msra.mxu0 %v644
  %814 = vmatpush.msra.mxu0 %v643
  %815 = vmatpush.msra.mxu0 %v642
  %816 = vmatpush.msra.mxu0 %v641
  %817 = vmatpush.msra.mxu0 %v640
  %818 = vmatpush.msra.mxu0 %v639
  %819 = vmatpush.msra.mxu0 %v638
  %820 = vmatpush.msra.mxu0 %v637
  %821 = vmatpush.msra.mxu0 %v636
  %822 = vmatpush.msra.mxu0 %v635
  %823 = vmatmul.f32.gmra.mxu0 %v805
  %v824 = vpop.f32.mrf.mxu0
  %v825 = vadd.f32 0.0, %v824
  %826 = vdwg.mxu0
  %v827 = vadd.f32 %v803, %v825
  %v829 = vsel %vm606, %v590, 0
  %831 = vmatpush.msra.mxu0 0.0
  %832 = vmatpush.msra.mxu0 0.0
  %833 = vmatpush.msra.mxu0 %v687
  %834 = vmatpush.msra.mxu0 %v686
  %835 = vmatpush.msra.mxu0 %v685
  %836 = vmatpush.msra.mxu0 %v684
  %837 = vmatpush.msra.mxu0 %v683
  %838 = vmatpush.msra.mxu0 %v682
  %839 = vmatpush.msra.mxu0 %v681
  %840 = vmatpush.msra.mxu0 %v680
  %841 = vmatpush.msra.mxu0 %v679
  %842 = vmatpush.msra.mxu0 %v678
  %843 = vmatpush.msra.mxu0 %v677
  %844 = vmatpush.msra.mxu0 %v676
  %845 = vmatpush.msra.mxu0 %v675
  %846 = vmatpush.msra.mxu0 %v674
  %847 = vmatmul.f32.gmra.mxu0 %v829
  %v848 = vpop.f32.mrf.mxu0
  %v849 = vadd.f32 0.0, %v848
  %850 = vdwg.mxu0
  %v851 = vadd.f32 %v827, %v849
  %v852 = vmax.f32 %v851, 0.0
  %v853 = vld [vmem:[%s6] sm:$0x1]
  %v854 = vld [vmem:[%s5] sm:$0xff]
  %v855 = vld [vmem:[%s5 + $0x8] sm:$0xff]
  %v856 = vld [vmem:[%s5 + $0x10] sm:$0xff]
  %v857 = vld [vmem:[%s5 + $0x18] sm:$0xff]
  %v858 = vld [vmem:[%s5 + $0x20] sm:$0xff]
  %v859 = vld [vmem:[%s5 + $0x28] sm:$0xff]
  %v860 = vld [vmem:[%s5 + $0x30] sm:$0xff]
  %v861 = vld [vmem:[%s5 + $0x38] sm:$0xff]
  %v862 = vld [vmem:[%s5 + $0x40] sm:$0xff]
  %v863 = vld [vmem:[%s5 + $0x48] sm:$0xff]
  %v864 = vld [vmem:[%s5 + $0x50] sm:$0xff]
  %v865 = vld [vmem:[%s5 + $0x58] sm:$0xff]
  %vm866 = vcmask 785408
  %v868 = vsel %vm866, %v712, 0
  %870 = vmatpush.msra.mxu0 0.0
  %871 = vmatpush.msra.mxu0 0.0
  %872 = vmatpush.msra.mxu0 0.0
  %873 = vmatpush.msra.mxu0 0.0
  %874 = vmatpush.msra.mxu0 %v865
  %875 = vmatpush.msra.mxu0 %v864
  %876 = vmatpush.msra.mxu0 %v863
  %877 = vmatpush.msra.mxu0 %v862
  %878 = vmatpush.msra.mxu0 %v861
  %879 = vmatpush.msra.mxu0 %v860
  %880 = vmatpush.msra.mxu0 %v859
  %881 = vmatpush.msra.mxu0 %v858
  %882 = vmatpush.msra.mxu0 %v857
  %883 = vmatpush.msra.mxu0 %v856
  %884 = vmatpush.msra.mxu0 %v855
  %885 = vmatpush.msra.mxu0 %v854
  %886 = vmatmul.f32.gmra.mxu0 %v868
  %v887 = vpop.f32.mrf.mxu0
  %v888 = vadd.f32 0.0, %v887
  %889 = vdwg.mxu0
  %v891 = vperm.slane %v853, 0
  %v893 = vadd.f32 %v891, %v888
  %s894 = scalar_lea.vmem %s5, 96
  %v895 = vld [vmem:[%s894] sm:$0xff]
  %v896 = vld [vmem:[%s894 + $0x8] sm:$0xff]
  %v897 = vld [vmem:[%s894 + $0x10] sm:$0xff]
  %v898 = vld [vmem:[%s894 + $0x18] sm:$0xff]
  %v899 = vld [vmem:[%s894 + $0x20] sm:$0xff]
  %v900 = vld [vmem:[%s894 + $0x28] sm:$0xff]
  %v901 = vld [vmem:[%s894 + $0x30] sm:$0xff]
  %v902 = vld [vmem:[%s894 + $0x38] sm:$0xff]
  %v903 = vld [vmem:[%s894 + $0x40] sm:$0xff]
  %v904 = vld [vmem:[%s894 + $0x48] sm:$0xff]
  %v905 = vld [vmem:[%s894 + $0x50] sm:$0xff]
  %v906 = vld [vmem:[%s894 + $0x58] sm:$0xff]
  %v908 = vsel %vm866, %v782, 0
  %910 = vmatpush.msra.mxu0 0.0
  %911 = vmatpush.msra.mxu0 0.0
  %912 = vmatpush.msra.mxu0 0.0
  %913 = vmatpush.msra.mxu0 0.0
  %914 = vmatpush.msra.mxu0 %v906
  %915 = vmatpush.msra.mxu0 %v905
  %916 = vmatpush.msra.mxu0 %v904
  %917 = vmatpush.msra.mxu0 %v903
  %918 = vmatpush.msra.mxu0 %v902
  %919 = vmatpush.msra.mxu0 %v901
  %920 = vmatpush.msra.mxu0 %v900
  %921 = vmatpush.msra.mxu0 %v899
  %922 = vmatpush.msra.mxu0 %v898
  %923 = vmatpush.msra.mxu0 %v897
  %924 = vmatpush.msra.mxu0 %v896
  %925 = vmatpush.msra.mxu0 %v895
  %926 = vmatmul.f32.gmra.mxu0 %v908
  %v927 = vpop.f32.mrf.mxu0
  %v928 = vadd.f32 0.0, %v927
  %929 = vdwg.mxu0
  %v930 = vadd.f32 %v893, %v928
  %s931 = scalar_lea.vmem %s5, 192
  %v932 = vld [vmem:[%s931] sm:$0xff]
  %v933 = vld [vmem:[%s931 + $0x8] sm:$0xff]
  %v934 = vld [vmem:[%s931 + $0x10] sm:$0xff]
  %v935 = vld [vmem:[%s931 + $0x18] sm:$0xff]
  %v936 = vld [vmem:[%s931 + $0x20] sm:$0xff]
  %v937 = vld [vmem:[%s931 + $0x28] sm:$0xff]
  %v938 = vld [vmem:[%s931 + $0x30] sm:$0xff]
  %v939 = vld [vmem:[%s931 + $0x38] sm:$0xff]
  %v940 = vld [vmem:[%s931 + $0x40] sm:$0xff]
  %v941 = vld [vmem:[%s931 + $0x48] sm:$0xff]
  %v942 = vld [vmem:[%s931 + $0x50] sm:$0xff]
  %v943 = vld [vmem:[%s931 + $0x58] sm:$0xff]
  %v945 = vsel %vm866, %v852, 0
  %947 = vmatpush.msra.mxu0 0.0
  %948 = vmatpush.msra.mxu0 0.0
  %949 = vmatpush.msra.mxu0 0.0
  %950 = vmatpush.msra.mxu0 0.0
  %951 = vmatpush.msra.mxu0 %v943
  %952 = vmatpush.msra.mxu0 %v942
  %953 = vmatpush.msra.mxu0 %v941
  %954 = vmatpush.msra.mxu0 %v940
  %955 = vmatpush.msra.mxu0 %v939
  %956 = vmatpush.msra.mxu0 %v938
  %957 = vmatpush.msra.mxu0 %v937
  %958 = vmatpush.msra.mxu0 %v936
  %959 = vmatpush.msra.mxu0 %v935
  %960 = vmatpush.msra.mxu0 %v934
  %961 = vmatpush.msra.mxu0 %v933
  %962 = vmatpush.msra.mxu0 %v932
  %963 = vmatmul.f32.gmra.mxu0 %v945
  %v964 = vpop.f32.mrf.mxu0
  %v965 = vadd.f32 0.0, %v964
  %966 = vdwg.mxu0
  %v967 = vadd.f32 %v930, %v965
  %v968 = vmax.f32 %v967, 0.0
  %v969 = vld [vmem:[%s7] sm:$0xff]
  %v970 = vld [vmem:[%s7 + $0x8] sm:$0xff]
  %v971 = vld [vmem:[%s7 + $0x10] sm:$0xff]
  %v972 = vld [vmem:[%s7 + $0x18] sm:$0xff]
  %v973 = vld [vmem:[%s7 + $0x20] sm:$0xff]
  %v974 = vld [vmem:[%s7 + $0x28] sm:$0xff]
  %v975 = vld [vmem:[%s7 + $0x30] sm:$0xff]
  %v976 = vld [vmem:[%s7 + $0x38] sm:$0xff]
  %v977 = vld [vmem:[%s7 + $0x40] sm:$0xff]
  %v978 = vld [vmem:[%s7 + $0x48] sm:$0xff]
  %v979 = vld [vmem:[%s7 + $0x50] sm:$0xff]
  %v980 = vld [vmem:[%s7 + $0x58] sm:$0xff]
  %v981 = vld [vmem:[%s7 + $0x60] sm:$0xff]
  %v982 = vld [vmem:[%s7 + $0x68] sm:$0xff]
  %v983 = vld [vmem:[%s7 + $0x70] sm:$0xff]
  %v984 = vld [vmem:[%s7 + $0x78] sm:$0xff]
  %v985 = vld [vmem:[%s7 + $0x80] sm:$0xff]
  %v986 = vld [vmem:[%s7 + $0x88] sm:$0xff]
  %v987 = vld [vmem:[%s7 + $0x90] sm:$0xff]
  %v988 = vld [vmem:[%s7 + $0x98] sm:$0xff]
  %v989 = vld [vmem:[%s7 + $0xa0] sm:$0xff]
  %v990 = vld [vmem:[%s7 + $0xa8] sm:$0xff]
  %v991 = vld [vmem:[%s7 + $0xb0] sm:$0xff]
  %v992 = vld [vmem:[%s7 + $0xb8] sm:$0xff]
  %v993 = vld [vmem:[%s7 + $0xc0] sm:$0xff]
  %v994 = vld [vmem:[%s7 + $0xc8] sm:$0xff]
  %v995 = vld [vmem:[%s7 + $0xd0] sm:$0xff]
  %v996 = vld [vmem:[%s7 + $0xd8] sm:$0xff]
  %v997 = vld [vmem:[%s7 + $0xe0] sm:$0xff]
  %v998 = vld [vmem:[%s7 + $0xe8] sm:$0xff]
  %v999 = vld [vmem:[%s7 + $0xf0] sm:$0xff]
  %v1000 = vld [vmem:[%s7 + $0xf8] sm:$0xff]
  %v1001 = vld [vmem:[%s8] sm:$0xf]
  %v1003 = vperm.slane %v1001, 0
  %v1004 = vperm.slane %v1001, 1
  %v1005 = vperm.slane %v1001, 2
  %v1006 = vperm.slane %v1001, 3
  %v1012 = vsel %vm48, %v968, 0
  %1014 = vmatpush.msra.mxu0 0.0
  %1015 = vmatpush.msra.mxu0 0.0
  %1016 = vmatpush.msra.mxu0 0.0
  %1017 = vmatpush.msra.mxu0 0.0
  %1018 = vmatpush.msra.mxu0 0.0
  %1019 = vmatpush.msra.mxu0 0.0
  %1020 = vmatpush.msra.mxu0 0.0
  %1021 = vmatpush.msra.mxu0 0.0
  %1022 = vmatpush.msra.mxu0 %v997
  %1023 = vmatpush.msra.mxu0 %v993
  %1024 = vmatpush.msra.mxu0 %v989
  %1025 = vmatpush.msra.mxu0 %v985
  %1026 = vmatpush.msra.mxu0 %v981
  %1027 = vmatpush.msra.mxu0 %v977
  %1028 = vmatpush.msra.mxu0 %v973
  %1029 = vmatpush.msra.mxu0 %v969
  %1030 = vmatmul.f32.gmra.mxu0 %v1012
  %v1031 = vpop.f32.mrf.mxu0
  %v1032 = vadd.f32 %v1003, %v1031
  %1033 = vdwg.mxu0
  %1034 = vmatpush.msra.mxu0 0.0
  %1035 = vmatpush.msra.mxu0 0.0
  %1036 = vmatpush.msra.mxu0 0.0
  %1037 = vmatpush.msra.mxu0 0.0
  %1038 = vmatpush.msra.mxu0 0.0
  %1039 = vmatpush.msra.mxu0 0.0
  %1040 = vmatpush.msra.mxu0 0.0
  %1041 = vmatpush.msra.mxu0 0.0
  %1042 = vmatpush.msra.mxu0 %v998
  %1043 = vmatpush.msra.mxu0 %v994
  %1044 = vmatpush.msra.mxu0 %v990
  %1045 = vmatpush.msra.mxu0 %v986
  %1046 = vmatpush.msra.mxu0 %v982
  %1047 = vmatpush.msra.mxu0 %v978
  %1048 = vmatpush.msra.mxu0 %v974
  %1049 = vmatpush.msra.mxu0 %v970
  %1050 = vmatmul.f32.gmra.mxu0 %v1012
  %v1051 = vpop.f32.mrf.mxu0
  %v1052 = vadd.f32 %v1004, %v1051
  %1053 = vdwg.mxu0
  %1054 = vmatpush.msra.mxu0 0.0
  %1055 = vmatpush.msra.mxu0 0.0
  %1056 = vmatpush.msra.mxu0 0.0
  %1057 = vmatpush.msra.mxu0 0.0
  %1058 = vmatpush.msra.mxu0 0.0
  %1059 = vmatpush.msra.mxu0 0.0
  %1060 = vmatpush.msra.mxu0 0.0
  %1061 = vmatpush.msra.mxu0 0.0
  %1062 = vmatpush.msra.mxu0 %v999
  %1063 = vmatpush.msra.mxu0 %v995
  %1064 = vmatpush.msra.mxu0 %v991
  %1065 = vmatpush.msra.mxu0 %v987
  %1066 = vmatpush.msra.mxu0 %v983
  %1067 = vmatpush.msra.mxu0 %v979
  %1068 = vmatpush.msra.mxu0 %v975
  %1069 = vmatpush.msra.mxu0 %v971
  %1070 = vmatmul.f32.gmra.mxu0 %v1012
  %v1071 = vpop.f32.mrf.mxu0
  %v1072 = vadd.f32 %v1005, %v1071
  %1073 = vdwg.mxu0
  %1074 = vmatpush.msra.mxu0 0.0
  %1075 = vmatpush.msra.mxu0 0.0
  %1076 = vmatpush.msra.mxu0 0.0
  %1077 = vmatpush.msra.mxu0 0.0
  %1078 = vmatpush.msra.mxu0 0.0
  %1079 = vmatpush.msra.mxu0 0.0
  %1080 = vmatpush.msra.mxu0 0.0
  %1081 = vmatpush.msra.mxu0 0.0
  %1082 = vmatpush.msra.mxu0 %v1000
  %1083 = vmatpush.msra.mxu0 %v996
  %1084 = vmatpush.msra.mxu0 %v992
  %1085 = vmatpush.msra.mxu0 %v988
  %1086 = vmatpush.msra.mxu0 %v984
  %1087 = vmatpush.msra.mxu0 %v980
  %1088 = vmatpush.msra.mxu0 %v976
  %1089 = vmatpush.msra.mxu0 %v972
  %1090 = vmatmul.f32.gmra.mxu0 %v1012
  %v1091 = vpop.f32.mrf.mxu0
  %v1092 = vadd.f32 %v1006, %v1091
  %1093 = vdwg.mxu0
  %v1094 = vmax.f32 %v1032, 0.0
  %v1095 = vmax.f32 %v1052, 0.0
  %v1096 = vmax.f32 %v1072, 0.0
  %v1097 = vmax.f32 %v1092, 0.0
  %v1098 = vld [vmem:[%s9] sm:$0xff]
  %v1099 = vld [vmem:[%s9 + $0x8] sm:$0xff]
  %v1100 = vld [vmem:[%s9 + $0x10] sm:$0xff]
  %v1101 = vld [vmem:[%s9 + $0x18] sm:$0xff]
  %v1102 = vld [vmem:[%s9 + $0x20] sm:$0xff]
  %v1103 = vld [vmem:[%s9 + $0x28] sm:$0xff]
  %v1104 = vld [vmem:[%s9 + $0x30] sm:$0xff]
  %v1105 = vld [vmem:[%s9 + $0x38] sm:$0xff]
  %v1106 = vld [vmem:[%s9 + $0x40] sm:$0xff]
  %v1107 = vld [vmem:[%s9 + $0x48] sm:$0xff]
  %v1108 = vld [vmem:[%s9 + $0x50] sm:$0xff]
  %v1109 = vld [vmem:[%s9 + $0x58] sm:$0xff]
  %v1110 = vld [vmem:[%s9 + $0x60] sm:$0xff]
  %v1111 = vld [vmem:[%s9 + $0x68] sm:$0xff]
  %v1112 = vld [vmem:[%s9 + $0x70] sm:$0xff]
  %v1113 = vld [vmem:[%s9 + $0x78] sm:$0xff]
  %v1114 = vld [vmem:[%s9 + $0x80] sm:$0xff]
  %v1115 = vld [vmem:[%s9 + $0x88] sm:$0xff]
  %v1116 = vld [vmem:[%s9 + $0x90] sm:$0xff]
  %v1117 = vld [vmem:[%s9 + $0x98] sm:$0xff]
  %v1118 = vld [vmem:[%s9 + $0xa0] sm:$0xff]
  %v1119 = vld [vmem:[%s9 + $0xa8] sm:$0xff]
  %v1120 = vld [vmem:[%s9 + $0xb0] sm:$0xff]
  %v1121 = vld [vmem:[%s9 + $0xb8] sm:$0xff]
  %v1122 = vld [vmem:[%s9 + $0xc0] sm:$0xff]
  %v1123 = vld [vmem:[%s9 + $0xc8] sm:$0xff]
  %v1124 = vld [vmem:[%s9 + $0xd0] sm:$0xff]
  %v1125 = vld [vmem:[%s9 + $0xd8] sm:$0xff]
  %v1126 = vld [vmem:[%s9 + $0xe0] sm:$0xff]
  %v1127 = vld [vmem:[%s9 + $0xe8] sm:$0xff]
  %v1128 = vld [vmem:[%s9 + $0xf0] sm:$0xff]
  %v1129 = vld [vmem:[%s9 + $0xf8] sm:$0xff]
  %v1130 = vld [vmem:[%s9 + $0x100] sm:$0xff]
  %v1131 = vld [vmem:[%s9 + $0x108] sm:$0xff]
  %v1132 = vld [vmem:[%s9 + $0x110] sm:$0xff]
  %v1133 = vld [vmem:[%s9 + $0x118] sm:$0xff]
  %v1134 = vld [vmem:[%s9 + $0x120] sm:$0xff]
  %v1135 = vld [vmem:[%s9 + $0x128] sm:$0xff]
  %v1136 = vld [vmem:[%s9 + $0x130] sm:$0xff]
  %v1137 = vld [vmem:[%s9 + $0x138] sm:$0xff]
  %v1138 = vld [vmem:[%s9 + $0x140] sm:$0xff]
  %v1139 = vld [vmem:[%s9 + $0x148] sm:$0xff]
  %v1140 = vld [vmem:[%s9 + $0x150] sm:$0xff]
  %v1141 = vld [vmem:[%s9 + $0x158] sm:$0xff]
  %v1142 = vld [vmem:[%s9 + $0x160] sm:$0xff]
  %v1143 = vld [vmem:[%s9 + $0x168] sm:$0xff]
  %v1144 = vld [vmem:[%s9 + $0x170] sm:$0xff]
  %v1145 = vld [vmem:[%s9 + $0x178] sm:$0xff]
  %v1146 = vld [vmem:[%s9 + $0x180] sm:$0xff]
  %v1147 = vld [vmem:[%s9 + $0x188] sm:$0xff]
  %v1148 = vld [vmem:[%s9 + $0x190] sm:$0xff]
  %v1149 = vld [vmem:[%s9 + $0x198] sm:$0xff]
  %v1150 = vld [vmem:[%s9 + $0x1a0] sm:$0xff]
  %v1151 = vld [vmem:[%s9 + $0x1a8] sm:$0xff]
  %v1152 = vld [vmem:[%s9 + $0x1b0] sm:$0xff]
  %v1153 = vld [vmem:[%s9 + $0x1b8] sm:$0xff]
  %v1154 = vld [vmem:[%s9 + $0x1c0] sm:$0xff]
  %v1155 = vld [vmem:[%s9 + $0x1c8] sm:$0xff]
  %v1156 = vld [vmem:[%s9 + $0x1d0] sm:$0xff]
  %v1157 = vld [vmem:[%s9 + $0x1d8] sm:$0xff]
  %v1158 = vld [vmem:[%s9 + $0x1e0] sm:$0xff]
  %v1159 = vld [vmem:[%s9 + $0x1e8] sm:$0xff]
  %v1160 = vld [vmem:[%s9 + $0x1f0] sm:$0xff]
  %v1161 = vld [vmem:[%s9 + $0x1f8] sm:$0xff]
  %v1162 = vld [vmem:[%s10] sm:$0x1]
  %v1164 = vperm.slane %v1162, 0
  %1166 = vmatpush.msra.mxu0 %v1113
  %1167 = vmatpush.msra.mxu0 %v1112
  %1168 = vmatpush.msra.mxu0 %v1111
  %1169 = vmatpush.msra.mxu0 %v1110
  %1170 = vmatpush.msra.mxu0 %v1109
  %1171 = vmatpush.msra.mxu0 %v1108
  %1172 = vmatpush.msra.mxu0 %v1107
  %1173 = vmatpush.msra.mxu0 %v1106
  %1174 = vmatpush.msra.mxu0 %v1105
  %1175 = vmatpush.msra.mxu0 %v1104
  %1176 = vmatpush.msra.mxu0 %v1103
  %1177 = vmatpush.msra.mxu0 %v1102
  %1178 = vmatpush.msra.mxu0 %v1101
  %1179 = vmatpush.msra.mxu0 %v1100
  %1180 = vmatpush.msra.mxu0 %v1099
  %1181 = vmatpush.msra.mxu0 %v1098
  %1182 = vmatmul.f32.gmra.mxu0 %v1094
  %v1183 = vpop.f32.mrf.mxu0
  %v1184 = vadd.f32 %v1164, %v1183
  %1185 = vdwg.mxu0
  %1186 = vmatpush.msra.mxu0 %v1129
  %1187 = vmatpush.msra.mxu0 %v1128
  %1188 = vmatpush.msra.mxu0 %v1127
  %1189 = vmatpush.msra.mxu0 %v1126
  %1190 = vmatpush.msra.mxu0 %v1125
  %1191 = vmatpush.msra.mxu0 %v1124
  %1192 = vmatpush.msra.mxu0 %v1123
  %1193 = vmatpush.msra.mxu0 %v1122
  %1194 = vmatpush.msra.mxu0 %v1121
  %1195 = vmatpush.msra.mxu0 %v1120
  %1196 = vmatpush.msra.mxu0 %v1119
  %1197 = vmatpush.msra.mxu0 %v1118
  %1198 = vmatpush.msra.mxu0 %v1117
  %1199 = vmatpush.msra.mxu0 %v1116
  %1200 = vmatpush.msra.mxu0 %v1115
  %1201 = vmatpush.msra.mxu0 %v1114
  %1202 = vmatmul.f32.gmra.mxu0 %v1095
  %v1203 = vpop.f32.mrf.mxu0
  %v1204 = vadd.f32 %v1184, %v1203
  %1205 = vdwg.mxu0
  %1206 = vmatpush.msra.mxu0 %v1145
  %1207 = vmatpush.msra.mxu0 %v1144
  %1208 = vmatpush.msra.mxu0 %v1143
  %1209 = vmatpush.msra.mxu0 %v1142
  %1210 = vmatpush.msra.mxu0 %v1141
  %1211 = vmatpush.msra.mxu0 %v1140
  %1212 = vmatpush.msra.mxu0 %v1139
  %1213 = vmatpush.msra.mxu0 %v1138
  %1214 = vmatpush.msra.mxu0 %v1137
  %1215 = vmatpush.msra.mxu0 %v1136
  %1216 = vmatpush.msra.mxu0 %v1135
  %1217 = vmatpush.msra.mxu0 %v1134
  %1218 = vmatpush.msra.mxu0 %v1133
  %1219 = vmatpush.msra.mxu0 %v1132
  %1220 = vmatpush.msra.mxu0 %v1131
  %1221 = vmatpush.msra.mxu0 %v1130
  %1222 = vmatmul.f32.gmra.mxu0 %v1096
  %v1223 = vpop.f32.mrf.mxu0
  %v1224 = vadd.f32 %v1204, %v1223
  %1225 = vdwg.mxu0
  %1226 = vmatpush.msra.mxu0 %v1161
  %1227 = vmatpush.msra.mxu0 %v1160
  %1228 = vmatpush.msra.mxu0 %v1159
  %1229 = vmatpush.msra.mxu0 %v1158
  %1230 = vmatpush.msra.mxu0 %v1157
  %1231 = vmatpush.msra.mxu0 %v1156
  %1232 = vmatpush.msra.mxu0 %v1155
  %1233 = vmatpush.msra.mxu0 %v1154
  %1234 = vmatpush.msra.mxu0 %v1153
  %1235 = vmatpush.msra.mxu0 %v1152
  %1236 = vmatpush.msra.mxu0 %v1151
  %1237 = vmatpush.msra.mxu0 %v1150
  %1238 = vmatpush.msra.mxu0 %v1149
  %1239 = vmatpush.msra.mxu0 %v1148
  %1240 = vmatpush.msra.mxu0 %v1147
  %1241 = vmatpush.msra.mxu0 %v1146
  %1242 = vmatmul.f32.gmra.mxu0 %v1097
  %v1243 = vpop.f32.mrf.mxu0
  %v1244 = vadd.f32 %v1224, %v1243
  %1245 = vdwg.mxu0
  %v1246 = vlaneseq
  %v1247 = vand.u32 %v1246, 127
  %vm1248 = vcmp.eq.s32.totalorder %v1247, 0
  %v1249 = vsel %vm1248, %v1244, 0.0
  %1250 = vadd.xlane.f32.xlu0 %v1249
  %v1251 = vpop.xlane.xlu0 %1250
  %vm1252 = vcmp.ge.s32.totalorder %v1247, 1
  %vm1253 = vcmp.le.s32.totalorder %v1247, 6
  %vm1254 = vmand %vm1252, %vm1253
  %v1255 = vsel %vm1254, %v1244, 0.0
  %1256 = vadd.xlane.f32.xlu0 %v1255
  %v1257 = vpop.xlane.xlu0 %1256
  %v1258 = vmul.f32 %v1257, 0.16666667
  %v1259 = vadd.f32 %v1251, %v1244
  %v1260 = vsub.f32 %v1259, %v1258
  %1261 = vst [vmem:[%s11] sm:$0xff] %v1260
  // Predicated region
  $region46: #{dqn_forward.1} parent=0 // pred_check
    _
  $region47: #{dqn_forward.1} parent=0 // pred_check_branch
    %1263 = sbr.rel (0) target = $region49
  $region48: #{dqn_forward.1} parent=0 // pred_region
    _
  $region49: #{dqn_forward.1} parent=0 // pred_fallthru
    _
  // Predicated region
  $region50: #{dqn_forward.1} parent=0 // pred_check
    _
  $region51: #{dqn_forward.1} parent=0 // pred_check_branch
    %1265 = sbr.rel (0) target = $region53
  $region52: #{dqn_forward.1} parent=0 // pred_region
    _
  $region53: #{dqn_forward.1} parent=0 // pred_fallthru
    _

</llo_original>
